<compile_context>
chip_gen: v7x
topology: tpu7x:2x2x1
jax: 0.10.0
libtpu: 0.0.40
codegen_flags: <defaults>
</compile_context>

<pallas_src>
import functools

import jax
import jax.numpy as jnp
import numpy as np
from jax import lax
from jax.experimental import pallas as pl
from jax.experimental.pallas import tpu as pltpu


def _round_up(x, m):
    return ((x + m - 1) // m) * m


def _gru_chunk_kernel(gi_ref, whh_ref, bhh_ref, o_ref, h_ref, *, tc):
    """One grid step == `tc` timesteps of the GRU for the whole (padded) batch.

    gi_ref : (Tc, 3, Bp, Hp)  precomputed input gates x@W_ih + b_ih, gate-major
    whh_ref: (3, Hp, Hp)      hidden->hidden weights, gate-major, zero-padded
    bhh_ref: (3, 1, Hp)       hidden bias, gate-major, zero-padded
    o_ref  : (Tc, Bp, Hp)     per-timestep hidden-state outputs for this chunk
    h_ref  : (Bp, Hp)         VMEM scratch carrying h across grid steps
    """
    c = pl.program_id(0)

    @pl.when(c == 0)
    def _():
        h_ref[...] = jnp.zeros_like(h_ref)

    # Hoist the (small, reused) recurrent weights / biases out of the time loop
    # so each unrolled step reuses the same vregs instead of re-reading VMEM.
    w_r = whh_ref[0]
    w_z = whh_ref[1]
    w_n = whh_ref[2]
    b_r = bhh_ref[0]
    b_z = bhh_ref[1]
    b_n = bhh_ref[2]

    def step(i, h):
        gi_t = gi_ref[i]                                       # (3, Bp, Hp)
        gh_r = jnp.dot(h, w_r, preferred_element_type=jnp.float32) + b_r
        gh_z = jnp.dot(h, w_z, preferred_element_type=jnp.float32) + b_z
        gh_n = jnp.dot(h, w_n, preferred_element_type=jnp.float32) + b_n
        r = jax.nn.sigmoid(gi_t[0] + gh_r)
        z = jax.nn.sigmoid(gi_t[1] + gh_z)
        n = jnp.tanh(gi_t[2] + r * gh_n)
        h_new = (1.0 - z) * n + z * h
        o_ref[i] = h_new                                       # lane-dense store
        return h_new

    h_ref[...] = lax.fori_loop(0, tc, step, h_ref[...], unroll=True)


def gru_recurrence_pallas(gi, whh, bhh, *, time_chunk):
    """gi: (Tp,3,Bp,Hp) f32, whh: (3,Hp,Hp), bhh: (3,1,Hp) -> (Tp,Bp,Hp) f32."""
    Tp, _, Bp, Hp = gi.shape
    Tc = time_chunk
    assert Tp % Tc == 0

    kernel = functools.partial(_gru_chunk_kernel, tc=Tc)
    return pl.pallas_call(
        kernel,
        out_shape=jax.ShapeDtypeStruct((Tp, Bp, Hp), jnp.float32),
        grid_spec=pltpu.PrefetchScalarGridSpec(
            num_scalar_prefetch=0,
            grid=(Tp // Tc,),
            in_specs=[
                pl.BlockSpec((Tc, 3, Bp, Hp), lambda c: (c, 0, 0, 0)),
                pl.BlockSpec((3, Hp, Hp), lambda c: (0, 0, 0)),
                pl.BlockSpec((3, 1, Hp), lambda c: (0, 0, 0)),
            ],
            out_specs=pl.BlockSpec((Tc, Bp, Hp), lambda c: (c, 0, 0)),
            scratch_shapes=[pltpu.VMEM((Bp, Hp), jnp.float32)],
        ),
        # Time is a true recurrence -> must stay sequential ("arbitrary").
        compiler_params=pltpu.CompilerParams(
            dimension_semantics=("arbitrary",)),
    )(gi, whh, bhh)


def gru_encoder_forward(token_ids, params, *, time_chunk=8):
    """token_ids: (B, T) int32 -> (B, T, H) float32 (PyTorch batch_first)."""
    emb = params["embedding"]            # (V, E)
    w_ih = params["w_ih"]                # (E, 3H)  gate order [r, z, n]
    w_hh = params["w_hh"]                # (H, 3H)
    b_ih = params["b_ih"]                # (1, 3H)
    b_hh = params["b_hh"]                # (1, 3H)

    B, T = token_ids.shape
    H = w_hh.shape[0]

    Hp = _round_up(H, 128)               # lane-dense hidden
    Bp = _round_up(B, 8)                 # f32 sublane tile
    Tc = max(1, min(time_chunk, T))
    Tp = _round_up(T, Tc)

    # --- Hoisted, non-recurrent work (XLA glue): gather + ONE big matmul. ---
    # TODO(synk): at large E the gather could be fused via scalar-prefetched
    # token ids inside the kernel; not worth it at E=32.
    tok_tb = jnp.transpose(token_ids)                      # (T, B) time-major
    x = jnp.take(emb, tok_tb.reshape(-1), axis=0)          # (T*B, E)
    gi = x @ w_ih + b_ih                                   # (T*B, 3H)
    gi = gi.reshape(T, B, 3, H).transpose(0, 2, 1, 3)      # (T, 3, B, H)
    gi = jnp.pad(gi, ((0, Tp - T), (0, 0), (0, Bp - B), (0, Hp - H)))

    # Gate-major, zero-padded recurrent weights/bias. Zero padding keeps the
    # padded hidden columns exactly 0 through the recurrence (no masking).
    whh = w_hh.reshape(H, 3, H).transpose(1, 0, 2)         # (3, H, H)
    whh = jnp.pad(whh, ((0, 0), (0, Hp - H), (0, Hp - H)))
    bhh = jnp.pad(b_hh.reshape(3, 1, H), ((0, 0), (0, 0), (0, Hp - H)))

    out = gru_recurrence_pallas(gi, whh, bhh, time_chunk=Tc)   # (Tp, Bp, Hp)
    return jnp.transpose(out[:T, :B, :H], (1, 0, 2))           # (B, T, H)


def gru_encoder_reference(token_ids, params):
    """Pure-JAX reference replicating torch.nn.GRU(batch_first=True)."""
    emb = params["embedding"]
    embedded = jnp.take(emb, token_ids, axis=0)            # (B, T, E)
    B, T, _ = embedded.shape
    H = params["w_hh"].shape[0]
    w_ih, w_hh = params["w_ih"], params["w_hh"]
    b_ih, b_hh = params["b_ih"][0], params["b_hh"][0]

    def step(h, x_t):
        gi = x_t @ w_ih + b_ih
        gh = h @ w_hh + b_hh
        r = jax.nn.sigmoid(gi[:, :H] + gh[:, :H])
        z = jax.nn.sigmoid(gi[:, H:2 * H] + gh[:, H:2 * H])
        n = jnp.tanh(gi[:, 2 * H:] + r * gh[:, 2 * H:])
        h_new = (1.0 - z) * n + z * h
        return h_new, h_new

    h0 = jnp.zeros((B, H), jnp.float32)
    _, outs = jax.lax.scan(step, h0, jnp.transpose(embedded, (1, 0, 2)))
    return jnp.transpose(outs, (1, 0, 2))


def init_params(key, vocab_size, embed_size, hidden_size):
    """Parameter init mirroring nn.Embedding / nn.GRU shapes.

    PyTorch stores weight_ih_l0 as (3H, E) in gate order [r, z, n]; we keep the
    transposed (E, 3H) layout so the projection is x @ W directly.
    """
    k_emb, k_wih, k_whh, k_bih, k_bhh = jax.random.split(key, 5)
    bound = 1.0 / np.sqrt(hidden_size)
    return {
        "embedding": jax.random.normal(k_emb, (vocab_size, embed_size), jnp.float32),
        "w_ih": jax.random.uniform(k_wih, (embed_size, 3 * hidden_size),
                                   jnp.float32, -bound, bound),
        "w_hh": jax.random.uniform(k_whh, (hidden_size, 3 * hidden_size),
                                   jnp.float32, -bound, bound),
        "b_ih": jax.random.uniform(k_bih, (1, 3 * hidden_size),
                                   jnp.float32, -bound, bound),
        "b_hh": jax.random.uniform(k_bhh, (1, 3 * hidden_size),
                                   jnp.float32, -bound, bound),
    }


if __name__ == "__main__":
    vocab_size, embed_size, hidden_size = 50, 32, 32
    batch, seq = 2, 8

    root = jax.random.PRNGKey(0)
    k_params, k_tokens = jax.random.split(root)
    params = init_params(k_params, vocab_size, embed_size, hidden_size)
    token_ids = jax.random.randint(k_tokens, (batch, seq), 0, vocab_size, jnp.int32)

    forward = jax.jit(gru_encoder_forward)
    out = jax.block_until_ready(forward(token_ids, params))

    ref = jax.block_until_ready(gru_encoder_reference(token_ids, params))
    assert out.shape == (batch, seq, hidden_size)
    np.testing.assert_allclose(np.asarray(out), np.asarray(ref),
                               rtol=1e-4, atol=1e-5)

    print("KERNEL_OK")
</pallas_src>

<mosaic_0001>
module attributes {stable_mosaic.version = 11 : i64} {
  func.func @_gru_chunk_kernel(%arg0: i32, %arg1: memref<8x3x8x128xf32, #tpu.memory_space<vmem>>, %arg2: memref<3x128x128xf32, #tpu.memory_space<vmem>>, %arg3: memref<3x1x128xf32, #tpu.memory_space<vmem>>, %arg4: memref<8x8x128xf32, #tpu.memory_space<vmem>>, %arg5: memref<8x128xf32, #tpu.memory_space<vmem>>) attributes {dimension_semantics = [#tpu.dimension_semantics<arbitrary>], iteration_bounds = array<i64: 1>, scalar_prefetch = 0 : i64, scratch_operands = 1 : i64, tpu.core_type = #tpu.core_type<tc>, window_params = [{transform_indices = @transform_0, window_bounds = array<i64: 8, 3, 8, 128>}, {pipeline_mode = #tpu.pipeline_mode<synchronous>, transform_indices = @transform_1, window_bounds = array<i64: 3, 128, 128>}, {pipeline_mode = #tpu.pipeline_mode<synchronous>, transform_indices = @transform_2, window_bounds = array<i64: 3, 1, 128>}, {transform_indices = @transform_3, window_bounds = array<i64: 8, 8, 128>}]} {
    %c0_i32 = arith.constant 0 : i32
    %0 = arith.cmpi eq, %arg0, %c0_i32 : i32
    %1 = arith.extui %0 : i1 to i32
    %c0_i32_0 = arith.constant 0 : i32
    %2 = arith.cmpi ne, %1, %c0_i32_0 : i32
    scf.if %2 {
      %cst_108 = arith.constant 0.000000e+00 : f32
      %353 = vector.broadcast %cst_108 : f32 to vector<8x128xf32>
      %c0_109 = arith.constant 0 : index
      %c0_110 = arith.constant 0 : index
      %354 = vector.load %arg5[%c0_109, %c0_110] : memref<8x128xf32, #tpu.memory_space<vmem>>, vector<8x128xf32>
      tpu.vector_store %arg5[%c0_109, %c0_110], %353 {strides = array<i32>} : memref<8x128xf32, #tpu.memory_space<vmem>>, vector<8x128xf32>,
    } else {
    }
    %c0 = arith.constant 0 : index
    %c0_1 = arith.constant 0 : index
    %c0_2 = arith.constant 0 : index
    %3 = vector.load %arg2[%c0, %c0_1, %c0_2] : memref<3x128x128xf32, #tpu.memory_space<vmem>>, vector<1x128x128xf32>
    %4 = vector.shape_cast %3 : vector<1x128x128xf32> to vector<128x128xf32>
    %c1 = arith.constant 1 : index
    %c0_3 = arith.constant 0 : index
    %c0_4 = arith.constant 0 : index
    %5 = vector.load %arg2[%c1, %c0_3, %c0_4] : memref<3x128x128xf32, #tpu.memory_space<vmem>>, vector<1x128x128xf32>
    %6 = vector.shape_cast %5 : vector<1x128x128xf32> to vector<128x128xf32>
    %c2 = arith.constant 2 : index
    %c0_5 = arith.constant 0 : index
    %c0_6 = arith.constant 0 : index
    %7 = vector.load %arg2[%c2, %c0_5, %c0_6] : memref<3x128x128xf32, #tpu.memory_space<vmem>>, vector<1x128x128xf32>
    %8 = vector.shape_cast %7 : vector<1x128x128xf32> to vector<128x128xf32>
    %c0_7 = arith.constant 0 : index
    %c0_8 = arith.constant 0 : index
    %c0_9 = arith.constant 0 : index
    %9 = vector.load %arg3[%c0_7, %c0_8, %c0_9] : memref<3x1x128xf32, #tpu.memory_space<vmem>>, vector<1x1x128xf32>
    %10 = vector.shape_cast %9 : vector<1x1x128xf32> to vector<1x128xf32>
    %c1_10 = arith.constant 1 : index
    %c0_11 = arith.constant 0 : index
    %c0_12 = arith.constant 0 : index
    %11 = vector.load %arg3[%c1_10, %c0_11, %c0_12] : memref<3x1x128xf32, #tpu.memory_space<vmem>>, vector<1x1x128xf32>
    %12 = vector.shape_cast %11 : vector<1x1x128xf32> to vector<1x128xf32>
    %c2_13 = arith.constant 2 : index
    %c0_14 = arith.constant 0 : index
    %c0_15 = arith.constant 0 : index
    %13 = vector.load %arg3[%c2_13, %c0_14, %c0_15] : memref<3x1x128xf32, #tpu.memory_space<vmem>>, vector<1x1x128xf32>
    %14 = vector.shape_cast %13 : vector<1x1x128xf32> to vector<1x128xf32>
    %c0_16 = arith.constant 0 : index
    %c0_17 = arith.constant 0 : index
    %15 = vector.load %arg5[%c0_16, %c0_17] : memref<8x128xf32, #tpu.memory_space<vmem>>, vector<8x128xf32>
    %c0_i32_18 = arith.constant 0 : i32
    %16 = arith.index_cast %c0_i32_18 : i32 to index
    %c0_19 = arith.constant 0 : index
    %c0_20 = arith.constant 0 : index
    %c0_21 = arith.constant 0 : index
    %17 = vector.load %arg1[%16, %c0_19, %c0_20, %c0_21] : memref<8x3x8x128xf32, #tpu.memory_space<vmem>>, vector<1x3x8x128xf32>
    %18 = vector.shape_cast %17 : vector<1x3x8x128xf32> to vector<3x8x128xf32>
    %cst = arith.constant dense<0.000000e+00> : vector<8x128xf32>
    %19 = tpu.matmul %15, %4, %cst {dimension_numbers = #tpu.dot_dimension_numbers<[1], [0], [0], [1], [0, 0, 1, 1], [], []>} : vector<8x128xf32>, vector<128x128xf32>, vector<8x128xf32> -> vector<8x128xf32>
    %20 = vector.broadcast %10 : vector<1x128xf32> to vector<8x128xf32>
    %21 = arith.addf %19, %20 : vector<8x128xf32>
    %cst_22 = arith.constant dense<0.000000e+00> : vector<8x128xf32>
    %22 = tpu.matmul %15, %6, %cst_22 {dimension_numbers = #tpu.dot_dimension_numbers<[1], [0], [0], [1], [0, 0, 1, 1], [], []>} : vector<8x128xf32>, vector<128x128xf32>, vector<8x128xf32> -> vector<8x128xf32>
    %23 = vector.broadcast %12 : vector<1x128xf32> to vector<8x128xf32>
    %24 = arith.addf %22, %23 : vector<8x128xf32>
    %cst_23 = arith.constant dense<0.000000e+00> : vector<8x128xf32>
    %25 = tpu.matmul %15, %8, %cst_23 {dimension_numbers = #tpu.dot_dimension_numbers<[1], [0], [0], [1], [0, 0, 1, 1], [], []>} : vector<8x128xf32>, vector<128x128xf32>, vector<8x128xf32> -> vector<8x128xf32>
    %26 = vector.broadcast %14 : vector<1x128xf32> to vector<8x128xf32>
    %27 = arith.addf %25, %26 : vector<8x128xf32>
    %28 = vector.extract_strided_slice %18 {offsets = [0, 0, 0], sizes = [1, 8, 128], strides = [1, 1, 1]} : vector<3x8x128xf32> to vector<1x8x128xf32>
    %29 = vector.shape_cast %28 : vector<1x8x128xf32> to vector<8x128xf32>
    %30 = arith.addf %29, %21 : vector<8x128xf32>
    %31 = arith.negf %30 : vector<8x128xf32>
    %32 = math.exp %31 : vector<8x128xf32>
    %cst_24 = arith.constant 1.000000e+00 : f32
    %33 = vector.broadcast %cst_24 : f32 to vector<8x128xf32>
    %34 = arith.addf %33, %32 : vector<8x128xf32>
    %35 = arith.divf %33, %34 : vector<8x128xf32>
    %36 = vector.extract_strided_slice %18 {offsets = [1, 0, 0], sizes = [1, 8, 128], strides = [1, 1, 1]} : vector<3x8x128xf32> to vector<1x8x128xf32>
    %37 = vector.shape_cast %36 : vector<1x8x128xf32> to vector<8x128xf32>
    %38 = arith.addf %37, %24 : vector<8x128xf32>
    %39 = arith.negf %38 : vector<8x128xf32>
    %40 = math.exp %39 : vector<8x128xf32>
    %cst_25 = arith.constant 1.000000e+00 : f32
    %41 = vector.broadcast %cst_25 : f32 to vector<8x128xf32>
    %42 = arith.addf %41, %40 : vector<8x128xf32>
    %43 = arith.divf %41, %42 : vector<8x128xf32>
    %44 = vector.extract_strided_slice %18 {offsets = [2, 0, 0], sizes = [1, 8, 128], strides = [1, 1, 1]} : vector<3x8x128xf32> to vector<1x8x128xf32>
    %45 = vector.shape_cast %44 : vector<1x8x128xf32> to vector<8x128xf32>
    %46 = arith.mulf %35, %27 : vector<8x128xf32>
    %47 = arith.addf %45, %46 : vector<8x128xf32>
    %48 = math.tanh %47 : vector<8x128xf32>
    %cst_26 = arith.constant 1.000000e+00 : f32
    %49 = vector.broadcast %cst_26 : f32 to vector<8x128xf32>
    %50 = arith.subf %49, %43 : vector<8x128xf32>
    %51 = arith.mulf %50, %48 : vector<8x128xf32>
    %52 = arith.mulf %43, %15 : vector<8x128xf32>
    %53 = arith.addf %51, %52 : vector<8x128xf32>
    %54 = arith.index_cast %c0_i32_18 : i32 to index
    %c0_27 = arith.constant 0 : index
    %c0_28 = arith.constant 0 : index
    %55 = vector.load %arg4[%54, %c0_27, %c0_28] : memref<8x8x128xf32, #tpu.memory_space<vmem>>, vector<1x8x128xf32>
    %56 = vector.shape_cast %55 : vector<1x8x128xf32> to vector<8x128xf32>
    %57 = vector.shape_cast %53 : vector<8x128xf32> to vector<1x8x128xf32>
    tpu.vector_store %arg4[%54, %c0_27, %c0_28], %57 {strides = array<i32>} : memref<8x8x128xf32, #tpu.memory_space<vmem>>, vector<1x8x128xf32>,
    %c1_i32 = arith.constant 1 : i32
    %58 = arith.index_cast %c1_i32 : i32 to index
    %c0_29 = arith.constant 0 : index
    %c0_30 = arith.constant 0 : index
    %c0_31 = arith.constant 0 : index
    %59 = vector.load %arg1[%58, %c0_29, %c0_30, %c0_31] : memref<8x3x8x128xf32, #tpu.memory_space<vmem>>, vector<1x3x8x128xf32>
    %60 = vector.shape_cast %59 : vector<1x3x8x128xf32> to vector<3x8x128xf32>
    %cst_32 = arith.constant dense<0.000000e+00> : vector<8x128xf32>
    %61 = tpu.matmul %53, %4, %cst_32 {dimension_numbers = #tpu.dot_dimension_numbers<[1], [0], [0], [1], [0, 0, 1, 1], [], []>} : vector<8x128xf32>, vector<128x128xf32>, vector<8x128xf32> -> vector<8x128xf32>
    %62 = vector.broadcast %10 : vector<1x128xf32> to vector<8x128xf32>
    %63 = arith.addf %61, %62 : vector<8x128xf32>
    %cst_33 = arith.constant dense<0.000000e+00> : vector<8x128xf32>
    %64 = tpu.matmul %53, %6, %cst_33 {dimension_numbers = #tpu.dot_dimension_numbers<[1], [0], [0], [1], [0, 0, 1, 1], [], []>} : vector<8x128xf32>, vector<128x128xf32>, vector<8x128xf32> -> vector<8x128xf32>
    %65 = vector.broadcast %12 : vector<1x128xf32> to vector<8x128xf32>
    %66 = arith.addf %64, %65 : vector<8x128xf32>
    %cst_34 = arith.constant dense<0.000000e+00> : vector<8x128xf32>
    %67 = tpu.matmul %53, %8, %cst_34 {dimension_numbers = #tpu.dot_dimension_numbers<[1], [0], [0], [1], [0, 0, 1, 1], [], []>} : vector<8x128xf32>, vector<128x128xf32>, vector<8x128xf32> -> vector<8x128xf32>
    %68 = vector.broadcast %14 : vector<1x128xf32> to vector<8x128xf32>
    %69 = arith.addf %67, %68 : vector<8x128xf32>
    %70 = vector.extract_strided_slice %60 {offsets = [0, 0, 0], sizes = [1, 8, 128], strides = [1, 1, 1]} : vector<3x8x128xf32> to vector<1x8x128xf32>
    %71 = vector.shape_cast %70 : vector<1x8x128xf32> to vector<8x128xf32>
    %72 = arith.addf %71, %63 : vector<8x128xf32>
    %73 = arith.negf %72 : vector<8x128xf32>
    %74 = math.exp %73 : vector<8x128xf32>
    %cst_35 = arith.constant 1.000000e+00 : f32
    %75 = vector.broadcast %cst_35 : f32 to vector<8x128xf32>
    %76 = arith.addf %75, %74 : vector<8x128xf32>
    %77 = arith.divf %75, %76 : vector<8x128xf32>
    %78 = vector.extract_strided_slice %60 {offsets = [1, 0, 0], sizes = [1, 8, 128], strides = [1, 1, 1]} : vector<3x8x128xf32> to vector<1x8x128xf32>
    %79 = vector.shape_cast %78 : vector<1x8x128xf32> to vector<8x128xf32>
    %80 = arith.addf %79, %66 : vector<8x128xf32>
    %81 = arith.negf %80 : vector<8x128xf32>
    %82 = math.exp %81 : vector<8x128xf32>
    %cst_36 = arith.constant 1.000000e+00 : f32
    %83 = vector.broadcast %cst_36 : f32 to vector<8x128xf32>
    %84 = arith.addf %83, %82 : vector<8x128xf32>
    %85 = arith.divf %83, %84 : vector<8x128xf32>
    %86 = vector.extract_strided_slice %60 {offsets = [2, 0, 0], sizes = [1, 8, 128], strides = [1, 1, 1]} : vector<3x8x128xf32> to vector<1x8x128xf32>
    %87 = vector.shape_cast %86 : vector<1x8x128xf32> to vector<8x128xf32>
    %88 = arith.mulf %77, %69 : vector<8x128xf32>
    %89 = arith.addf %87, %88 : vector<8x128xf32>
    %90 = math.tanh %89 : vector<8x128xf32>
    %cst_37 = arith.constant 1.000000e+00 : f32
    %91 = vector.broadcast %cst_37 : f32 to vector<8x128xf32>
    %92 = arith.subf %91, %85 : vector<8x128xf32>
    %93 = arith.mulf %92, %90 : vector<8x128xf32>
    %94 = arith.mulf %85, %53 : vector<8x128xf32>
    %95 = arith.addf %93, %94 : vector<8x128xf32>
    %96 = arith.index_cast %c1_i32 : i32 to index
    %c0_38 = arith.constant 0 : index
    %c0_39 = arith.constant 0 : index
    %97 = vector.load %arg4[%96, %c0_38, %c0_39] : memref<8x8x128xf32, #tpu.memory_space<vmem>>, vector<1x8x128xf32>
    %98 = vector.shape_cast %97 : vector<1x8x128xf32> to vector<8x128xf32>
    %99 = vector.shape_cast %95 : vector<8x128xf32> to vector<1x8x128xf32>
    tpu.vector_store %arg4[%96, %c0_38, %c0_39], %99 {strides = array<i32>} : memref<8x8x128xf32, #tpu.memory_space<vmem>>, vector<1x8x128xf32>,
    %c2_i32 = arith.constant 2 : i32
    %100 = arith.index_cast %c2_i32 : i32 to index
    %c0_40 = arith.constant 0 : index
    %c0_41 = arith.constant 0 : index
    %c0_42 = arith.constant 0 : index
    %101 = vector.load %arg1[%100, %c0_40, %c0_41, %c0_42] : memref<8x3x8x128xf32, #tpu.memory_space<vmem>>, vector<1x3x8x128xf32>
    %102 = vector.shape_cast %101 : vector<1x3x8x128xf32> to vector<3x8x128xf32>
    %cst_43 = arith.constant dense<0.000000e+00> : vector<8x128xf32>
    %103 = tpu.matmul %95, %4, %cst_43 {dimension_numbers = #tpu.dot_dimension_numbers<[1], [0], [0], [1], [0, 0, 1, 1], [], []>} : vector<8x128xf32>, vector<128x128xf32>, vector<8x128xf32> -> vector<8x128xf32>
    %104 = vector.broadcast %10 : vector<1x128xf32> to vector<8x128xf32>
    %105 = arith.addf %103, %104 : vector<8x128xf32>
    %cst_44 = arith.constant dense<0.000000e+00> : vector<8x128xf32>
    %106 = tpu.matmul %95, %6, %cst_44 {dimension_numbers = #tpu.dot_dimension_numbers<[1], [0], [0], [1], [0, 0, 1, 1], [], []>} : vector<8x128xf32>, vector<128x128xf32>, vector<8x128xf32> -> vector<8x128xf32>
    %107 = vector.broadcast %12 : vector<1x128xf32> to vector<8x128xf32>
    %108 = arith.addf %106, %107 : vector<8x128xf32>
    %cst_45 = arith.constant dense<0.000000e+00> : vector<8x128xf32>
    %109 = tpu.matmul %95, %8, %cst_45 {dimension_numbers = #tpu.dot_dimension_numbers<[1], [0], [0], [1], [0, 0, 1, 1], [], []>} : vector<8x128xf32>, vector<128x128xf32>, vector<8x128xf32> -> vector<8x128xf32>
    %110 = vector.broadcast %14 : vector<1x128xf32> to vector<8x128xf32>
    %111 = arith.addf %109, %110 : vector<8x128xf32>
    %112 = vector.extract_strided_slice %102 {offsets = [0, 0, 0], sizes = [1, 8, 128], strides = [1, 1, 1]} : vector<3x8x128xf32> to vector<1x8x128xf32>
    %113 = vector.shape_cast %112 : vector<1x8x128xf32> to vector<8x128xf32>
    %114 = arith.addf %113, %105 : vector<8x128xf32>
    %115 = arith.negf %114 : vector<8x128xf32>
    %116 = math.exp %115 : vector<8x128xf32>
    %cst_46 = arith.constant 1.000000e+00 : f32
    %117 = vector.broadcast %cst_46 : f32 to vector<8x128xf32>
    %118 = arith.addf %117, %116 : vector<8x128xf32>
    %119 = arith.divf %117, %118 : vector<8x128xf32>
    %120 = vector.extract_strided_slice %102 {offsets = [1, 0, 0], sizes = [1, 8, 128], strides = [1, 1, 1]} : vector<3x8x128xf32> to vector<1x8x128xf32>
    %121 = vector.shape_cast %120 : vector<1x8x128xf32> to vector<8x128xf32>
    %122 = arith.addf %121, %108 : vector<8x128xf32>
    %123 = arith.negf %122 : vector<8x128xf32>
    %124 = math.exp %123 : vector<8x128xf32>
    %cst_47 = arith.constant 1.000000e+00 : f32
    %125 = vector.broadcast %cst_47 : f32 to vector<8x128xf32>
    %126 = arith.addf %125, %124 : vector<8x128xf32>
    %127 = arith.divf %125, %126 : vector<8x128xf32>
    %128 = vector.extract_strided_slice %102 {offsets = [2, 0, 0], sizes = [1, 8, 128], strides = [1, 1, 1]} : vector<3x8x128xf32> to vector<1x8x128xf32>
    %129 = vector.shape_cast %128 : vector<1x8x128xf32> to vector<8x128xf32>
    %130 = arith.mulf %119, %111 : vector<8x128xf32>
    %131 = arith.addf %129, %130 : vector<8x128xf32>
    %132 = math.tanh %131 : vector<8x128xf32>
    %cst_48 = arith.constant 1.000000e+00 : f32
    %133 = vector.broadcast %cst_48 : f32 to vector<8x128xf32>
    %134 = arith.subf %133, %127 : vector<8x128xf32>
    %135 = arith.mulf %134, %132 : vector<8x128xf32>
    %136 = arith.mulf %127, %95 : vector<8x128xf32>
    %137 = arith.addf %135, %136 : vector<8x128xf32>
    %138 = arith.index_cast %c2_i32 : i32 to index
    %c0_49 = arith.constant 0 : index
    %c0_50 = arith.constant 0 : index
    %139 = vector.load %arg4[%138, %c0_49, %c0_50] : memref<8x8x128xf32, #tpu.memory_space<vmem>>, vector<1x8x128xf32>
    %140 = vector.shape_cast %139 : vector<1x8x128xf32> to vector<8x128xf32>
    %141 = vector.shape_cast %137 : vector<8x128xf32> to vector<1x8x128xf32>
    tpu.vector_store %arg4[%138, %c0_49, %c0_50], %141 {strides = array<i32>} : memref<8x8x128xf32, #tpu.memory_space<vmem>>, vector<1x8x128xf32>,
    %c3_i32 = arith.constant 3 : i32
    %142 = arith.index_cast %c3_i32 : i32 to index
    %c0_51 = arith.constant 0 : index
    %c0_52 = arith.constant 0 : index
    %c0_53 = arith.constant 0 : index
    %143 = vector.load %arg1[%142, %c0_51, %c0_52, %c0_53] : memref<8x3x8x128xf32, #tpu.memory_space<vmem>>, vector<1x3x8x128xf32>
    %144 = vector.shape_cast %143 : vector<1x3x8x128xf32> to vector<3x8x128xf32>
    %cst_54 = arith.constant dense<0.000000e+00> : vector<8x128xf32>
    %145 = tpu.matmul %137, %4, %cst_54 {dimension_numbers = #tpu.dot_dimension_numbers<[1], [0], [0], [1], [0, 0, 1, 1], [], []>} : vector<8x128xf32>, vector<128x128xf32>, vector<8x128xf32> -> vector<8x128xf32>
    %146 = vector.broadcast %10 : vector<1x128xf32> to vector<8x128xf32>
    %147 = arith.addf %145, %146 : vector<8x128xf32>
    %cst_55 = arith.constant dense<0.000000e+00> : vector<8x128xf32>
    %148 = tpu.matmul %137, %6, %cst_55 {dimension_numbers = #tpu.dot_dimension_numbers<[1], [0], [0], [1], [0, 0, 1, 1], [], []>} : vector<8x128xf32>, vector<128x128xf32>, vector<8x128xf32> -> vector<8x128xf32>
    %149 = vector.broadcast %12 : vector<1x128xf32> to vector<8x128xf32>
    %150 = arith.addf %148, %149 : vector<8x128xf32>
    %cst_56 = arith.constant dense<0.000000e+00> : vector<8x128xf32>
    %151 = tpu.matmul %137, %8, %cst_56 {dimension_numbers = #tpu.dot_dimension_numbers<[1], [0], [0], [1], [0, 0, 1, 1], [], []>} : vector<8x128xf32>, vector<128x128xf32>, vector<8x128xf32> -> vector<8x128xf32>
    %152 = vector.broadcast %14 : vector<1x128xf32> to vector<8x128xf32>
    %153 = arith.addf %151, %152 : vector<8x128xf32>
    %154 = vector.extract_strided_slice %144 {offsets = [0, 0, 0], sizes = [1, 8, 128], strides = [1, 1, 1]} : vector<3x8x128xf32> to vector<1x8x128xf32>
    %155 = vector.shape_cast %154 : vector<1x8x128xf32> to vector<8x128xf32>
    %156 = arith.addf %155, %147 : vector<8x128xf32>
    %157 = arith.negf %156 : vector<8x128xf32>
    %158 = math.exp %157 : vector<8x128xf32>
    %cst_57 = arith.constant 1.000000e+00 : f32
    %159 = vector.broadcast %cst_57 : f32 to vector<8x128xf32>
    %160 = arith.addf %159, %158 : vector<8x128xf32>
    %161 = arith.divf %159, %160 : vector<8x128xf32>
    %162 = vector.extract_strided_slice %144 {offsets = [1, 0, 0], sizes = [1, 8, 128], strides = [1, 1, 1]} : vector<3x8x128xf32> to vector<1x8x128xf32>
    %163 = vector.shape_cast %162 : vector<1x8x128xf32> to vector<8x128xf32>
    %164 = arith.addf %163, %150 : vector<8x128xf32>
    %165 = arith.negf %164 : vector<8x128xf32>
    %166 = math.exp %165 : vector<8x128xf32>
    %cst_58 = arith.constant 1.000000e+00 : f32
    %167 = vector.broadcast %cst_58 : f32 to vector<8x128xf32>
    %168 = arith.addf %167, %166 : vector<8x128xf32>
    %169 = arith.divf %167, %168 : vector<8x128xf32>
    %170 = vector.extract_strided_slice %144 {offsets = [2, 0, 0], sizes = [1, 8, 128], strides = [1, 1, 1]} : vector<3x8x128xf32> to vector<1x8x128xf32>
    %171 = vector.shape_cast %170 : vector<1x8x128xf32> to vector<8x128xf32>
    %172 = arith.mulf %161, %153 : vector<8x128xf32>
    %173 = arith.addf %171, %172 : vector<8x128xf32>
    %174 = math.tanh %173 : vector<8x128xf32>
    %cst_59 = arith.constant 1.000000e+00 : f32
    %175 = vector.broadcast %cst_59 : f32 to vector<8x128xf32>
    %176 = arith.subf %175, %169 : vector<8x128xf32>
    %177 = arith.mulf %176, %174 : vector<8x128xf32>
    %178 = arith.mulf %169, %137 : vector<8x128xf32>
    %179 = arith.addf %177, %178 : vector<8x128xf32>
    %180 = arith.index_cast %c3_i32 : i32 to index
    %c0_60 = arith.constant 0 : index
    %c0_61 = arith.constant 0 : index
    %181 = vector.load %arg4[%180, %c0_60, %c0_61] : memref<8x8x128xf32, #tpu.memory_space<vmem>>, vector<1x8x128xf32>
    %182 = vector.shape_cast %181 : vector<1x8x128xf32> to vector<8x128xf32>
    %183 = vector.shape_cast %179 : vector<8x128xf32> to vector<1x8x128xf32>
    tpu.vector_store %arg4[%180, %c0_60, %c0_61], %183 {strides = array<i32>} : memref<8x8x128xf32, #tpu.memory_space<vmem>>, vector<1x8x128xf32>,
    %c4_i32 = arith.constant 4 : i32
    %184 = arith.index_cast %c4_i32 : i32 to index
    %c0_62 = arith.constant 0 : index
    %c0_63 = arith.constant 0 : index
    %c0_64 = arith.constant 0 : index
    %185 = vector.load %arg1[%184, %c0_62, %c0_63, %c0_64] : memref<8x3x8x128xf32, #tpu.memory_space<vmem>>, vector<1x3x8x128xf32>
    %186 = vector.shape_cast %185 : vector<1x3x8x128xf32> to vector<3x8x128xf32>
    %cst_65 = arith.constant dense<0.000000e+00> : vector<8x128xf32>
    %187 = tpu.matmul %179, %4, %cst_65 {dimension_numbers = #tpu.dot_dimension_numbers<[1], [0], [0], [1], [0, 0, 1, 1], [], []>} : vector<8x128xf32>, vector<128x128xf32>, vector<8x128xf32> -> vector<8x128xf32>
    %188 = vector.broadcast %10 : vector<1x128xf32> to vector<8x128xf32>
    %189 = arith.addf %187, %188 : vector<8x128xf32>
    %cst_66 = arith.constant dense<0.000000e+00> : vector<8x128xf32>
    %190 = tpu.matmul %179, %6, %cst_66 {dimension_numbers = #tpu.dot_dimension_numbers<[1], [0], [0], [1], [0, 0, 1, 1], [], []>} : vector<8x128xf32>, vector<128x128xf32>, vector<8x128xf32> -> vector<8x128xf32>
    %191 = vector.broadcast %12 : vector<1x128xf32> to vector<8x128xf32>
    %192 = arith.addf %190, %191 : vector<8x128xf32>
    %cst_67 = arith.constant dense<0.000000e+00> : vector<8x128xf32>
    %193 = tpu.matmul %179, %8, %cst_67 {dimension_numbers = #tpu.dot_dimension_numbers<[1], [0], [0], [1], [0, 0, 1, 1], [], []>} : vector<8x128xf32>, vector<128x128xf32>, vector<8x128xf32> -> vector<8x128xf32>
    %194 = vector.broadcast %14 : vector<1x128xf32> to vector<8x128xf32>
    %195 = arith.addf %193, %194 : vector<8x128xf32>
    %196 = vector.extract_strided_slice %186 {offsets = [0, 0, 0], sizes = [1, 8, 128], strides = [1, 1, 1]} : vector<3x8x128xf32> to vector<1x8x128xf32>
    %197 = vector.shape_cast %196 : vector<1x8x128xf32> to vector<8x128xf32>
    %198 = arith.addf %197, %189 : vector<8x128xf32>
    %199 = arith.negf %198 : vector<8x128xf32>
    %200 = math.exp %199 : vector<8x128xf32>
    %cst_68 = arith.constant 1.000000e+00 : f32
    %201 = vector.broadcast %cst_68 : f32 to vector<8x128xf32>
    %202 = arith.addf %201, %200 : vector<8x128xf32>
    %203 = arith.divf %201, %202 : vector<8x128xf32>
    %204 = vector.extract_strided_slice %186 {offsets = [1, 0, 0], sizes = [1, 8, 128], strides = [1, 1, 1]} : vector<3x8x128xf32> to vector<1x8x128xf32>
    %205 = vector.shape_cast %204 : vector<1x8x128xf32> to vector<8x128xf32>
    %206 = arith.addf %205, %192 : vector<8x128xf32>
    %207 = arith.negf %206 : vector<8x128xf32>
    %208 = math.exp %207 : vector<8x128xf32>
    %cst_69 = arith.constant 1.000000e+00 : f32
    %209 = vector.broadcast %cst_69 : f32 to vector<8x128xf32>
    %210 = arith.addf %209, %208 : vector<8x128xf32>
    %211 = arith.divf %209, %210 : vector<8x128xf32>
    %212 = vector.extract_strided_slice %186 {offsets = [2, 0, 0], sizes = [1, 8, 128], strides = [1, 1, 1]} : vector<3x8x128xf32> to vector<1x8x128xf32>
    %213 = vector.shape_cast %212 : vector<1x8x128xf32> to vector<8x128xf32>
    %214 = arith.mulf %203, %195 : vector<8x128xf32>
    %215 = arith.addf %213, %214 : vector<8x128xf32>
    %216 = math.tanh %215 : vector<8x128xf32>
    %cst_70 = arith.constant 1.000000e+00 : f32
    %217 = vector.broadcast %cst_70 : f32 to vector<8x128xf32>
    %218 = arith.subf %217, %211 : vector<8x128xf32>
    %219 = arith.mulf %218, %216 : vector<8x128xf32>
    %220 = arith.mulf %211, %179 : vector<8x128xf32>
    %221 = arith.addf %219, %220 : vector<8x128xf32>
    %222 = arith.index_cast %c4_i32 : i32 to index
    %c0_71 = arith.constant 0 : index
    %c0_72 = arith.constant 0 : index
    %223 = vector.load %arg4[%222, %c0_71, %c0_72] : memref<8x8x128xf32, #tpu.memory_space<vmem>>, vector<1x8x128xf32>
    %224 = vector.shape_cast %223 : vector<1x8x128xf32> to vector<8x128xf32>
    %225 = vector.shape_cast %221 : vector<8x128xf32> to vector<1x8x128xf32>
    tpu.vector_store %arg4[%222, %c0_71, %c0_72], %225 {strides = array<i32>} : memref<8x8x128xf32, #tpu.memory_space<vmem>>, vector<1x8x128xf32>,
    %c5_i32 = arith.constant 5 : i32
    %226 = arith.index_cast %c5_i32 : i32 to index
    %c0_73 = arith.constant 0 : index
    %c0_74 = arith.constant 0 : index
    %c0_75 = arith.constant 0 : index
    %227 = vector.load %arg1[%226, %c0_73, %c0_74, %c0_75] : memref<8x3x8x128xf32, #tpu.memory_space<vmem>>, vector<1x3x8x128xf32>
    %228 = vector.shape_cast %227 : vector<1x3x8x128xf32> to vector<3x8x128xf32>
    %cst_76 = arith.constant dense<0.000000e+00> : vector<8x128xf32>
    %229 = tpu.matmul %221, %4, %cst_76 {dimension_numbers = #tpu.dot_dimension_numbers<[1], [0], [0], [1], [0, 0, 1, 1], [], []>} : vector<8x128xf32>, vector<128x128xf32>, vector<8x128xf32> -> vector<8x128xf32>
    %230 = vector.broadcast %10 : vector<1x128xf32> to vector<8x128xf32>
    %231 = arith.addf %229, %230 : vector<8x128xf32>
    %cst_77 = arith.constant dense<0.000000e+00> : vector<8x128xf32>
    %232 = tpu.matmul %221, %6, %cst_77 {dimension_numbers = #tpu.dot_dimension_numbers<[1], [0], [0], [1], [0, 0, 1, 1], [], []>} : vector<8x128xf32>, vector<128x128xf32>, vector<8x128xf32> -> vector<8x128xf32>
    %233 = vector.broadcast %12 : vector<1x128xf32> to vector<8x128xf32>
    %234 = arith.addf %232, %233 : vector<8x128xf32>
    %cst_78 = arith.constant dense<0.000000e+00> : vector<8x128xf32>
    %235 = tpu.matmul %221, %8, %cst_78 {dimension_numbers = #tpu.dot_dimension_numbers<[1], [0], [0], [1], [0, 0, 1, 1], [], []>} : vector<8x128xf32>, vector<128x128xf32>, vector<8x128xf32> -> vector<8x128xf32>
    %236 = vector.broadcast %14 : vector<1x128xf32> to vector<8x128xf32>
    %237 = arith.addf %235, %236 : vector<8x128xf32>
    %238 = vector.extract_strided_slice %228 {offsets = [0, 0, 0], sizes = [1, 8, 128], strides = [1, 1, 1]} : vector<3x8x128xf32> to vector<1x8x128xf32>
    %239 = vector.shape_cast %238 : vector<1x8x128xf32> to vector<8x128xf32>
    %240 = arith.addf %239, %231 : vector<8x128xf32>
    %241 = arith.negf %240 : vector<8x128xf32>
    %242 = math.exp %241 : vector<8x128xf32>
    %cst_79 = arith.constant 1.000000e+00 : f32
    %243 = vector.broadcast %cst_79 : f32 to vector<8x128xf32>
    %244 = arith.addf %243, %242 : vector<8x128xf32>
    %245 = arith.divf %243, %244 : vector<8x128xf32>
    %246 = vector.extract_strided_slice %228 {offsets = [1, 0, 0], sizes = [1, 8, 128], strides = [1, 1, 1]} : vector<3x8x128xf32> to vector<1x8x128xf32>
    %247 = vector.shape_cast %246 : vector<1x8x128xf32> to vector<8x128xf32>
    %248 = arith.addf %247, %234 : vector<8x128xf32>
    %249 = arith.negf %248 : vector<8x128xf32>
    %250 = math.exp %249 : vector<8x128xf32>
    %cst_80 = arith.constant 1.000000e+00 : f32
    %251 = vector.broadcast %cst_80 : f32 to vector<8x128xf32>
    %252 = arith.addf %251, %250 : vector<8x128xf32>
    %253 = arith.divf %251, %252 : vector<8x128xf32>
    %254 = vector.extract_strided_slice %228 {offsets = [2, 0, 0], sizes = [1, 8, 128], strides = [1, 1, 1]} : vector<3x8x128xf32> to vector<1x8x128xf32>
    %255 = vector.shape_cast %254 : vector<1x8x128xf32> to vector<8x128xf32>
    %256 = arith.mulf %245, %237 : vector<8x128xf32>
    %257 = arith.addf %255, %256 : vector<8x128xf32>
    %258 = math.tanh %257 : vector<8x128xf32>
    %cst_81 = arith.constant 1.000000e+00 : f32
    %259 = vector.broadcast %cst_81 : f32 to vector<8x128xf32>
    %260 = arith.subf %259, %253 : vector<8x128xf32>
    %261 = arith.mulf %260, %258 : vector<8x128xf32>
    %262 = arith.mulf %253, %221 : vector<8x128xf32>
    %263 = arith.addf %261, %262 : vector<8x128xf32>
    %264 = arith.index_cast %c5_i32 : i32 to index
    %c0_82 = arith.constant 0 : index
    %c0_83 = arith.constant 0 : index
    %265 = vector.load %arg4[%264, %c0_82, %c0_83] : memref<8x8x128xf32, #tpu.memory_space<vmem>>, vector<1x8x128xf32>
    %266 = vector.shape_cast %265 : vector<1x8x128xf32> to vector<8x128xf32>
    %267 = vector.shape_cast %263 : vector<8x128xf32> to vector<1x8x128xf32>
    tpu.vector_store %arg4[%264, %c0_82, %c0_83], %267 {strides = array<i32>} : memref<8x8x128xf32, #tpu.memory_space<vmem>>, vector<1x8x128xf32>,
    %c6_i32 = arith.constant 6 : i32
    %268 = arith.index_cast %c6_i32 : i32 to index
    %c0_84 = arith.constant 0 : index
    %c0_85 = arith.constant 0 : index
    %c0_86 = arith.constant 0 : index
    %269 = vector.load %arg1[%268, %c0_84, %c0_85, %c0_86] : memref<8x3x8x128xf32, #tpu.memory_space<vmem>>, vector<1x3x8x128xf32>
    %270 = vector.shape_cast %269 : vector<1x3x8x128xf32> to vector<3x8x128xf32>
    %cst_87 = arith.constant dense<0.000000e+00> : vector<8x128xf32>
    %271 = tpu.matmul %263, %4, %cst_87 {dimension_numbers = #tpu.dot_dimension_numbers<[1], [0], [0], [1], [0, 0, 1, 1], [], []>} : vector<8x128xf32>, vector<128x128xf32>, vector<8x128xf32> -> vector<8x128xf32>
    %272 = vector.broadcast %10 : vector<1x128xf32> to vector<8x128xf32>
    %273 = arith.addf %271, %272 : vector<8x128xf32>
    %cst_88 = arith.constant dense<0.000000e+00> : vector<8x128xf32>
    %274 = tpu.matmul %263, %6, %cst_88 {dimension_numbers = #tpu.dot_dimension_numbers<[1], [0], [0], [1], [0, 0, 1, 1], [], []>} : vector<8x128xf32>, vector<128x128xf32>, vector<8x128xf32> -> vector<8x128xf32>
    %275 = vector.broadcast %12 : vector<1x128xf32> to vector<8x128xf32>
    %276 = arith.addf %274, %275 : vector<8x128xf32>
    %cst_89 = arith.constant dense<0.000000e+00> : vector<8x128xf32>
    %277 = tpu.matmul %263, %8, %cst_89 {dimension_numbers = #tpu.dot_dimension_numbers<[1], [0], [0], [1], [0, 0, 1, 1], [], []>} : vector<8x128xf32>, vector<128x128xf32>, vector<8x128xf32> -> vector<8x128xf32>
    %278 = vector.broadcast %14 : vector<1x128xf32> to vector<8x128xf32>
    %279 = arith.addf %277, %278 : vector<8x128xf32>
    %280 = vector.extract_strided_slice %270 {offsets = [0, 0, 0], sizes = [1, 8, 128], strides = [1, 1, 1]} : vector<3x8x128xf32> to vector<1x8x128xf32>
    %281 = vector.shape_cast %280 : vector<1x8x128xf32> to vector<8x128xf32>
    %282 = arith.addf %281, %273 : vector<8x128xf32>
    %283 = arith.negf %282 : vector<8x128xf32>
    %284 = math.exp %283 : vector<8x128xf32>
    %cst_90 = arith.constant 1.000000e+00 : f32
    %285 = vector.broadcast %cst_90 : f32 to vector<8x128xf32>
    %286 = arith.addf %285, %284 : vector<8x128xf32>
    %287 = arith.divf %285, %286 : vector<8x128xf32>
    %288 = vector.extract_strided_slice %270 {offsets = [1, 0, 0], sizes = [1, 8, 128], strides = [1, 1, 1]} : vector<3x8x128xf32> to vector<1x8x128xf32>
    %289 = vector.shape_cast %288 : vector<1x8x128xf32> to vector<8x128xf32>
    %290 = arith.addf %289, %276 : vector<8x128xf32>
    %291 = arith.negf %290 : vector<8x128xf32>
    %292 = math.exp %291 : vector<8x128xf32>
    %cst_91 = arith.constant 1.000000e+00 : f32
    %293 = vector.broadcast %cst_91 : f32 to vector<8x128xf32>
    %294 = arith.addf %293, %292 : vector<8x128xf32>
    %295 = arith.divf %293, %294 : vector<8x128xf32>
    %296 = vector.extract_strided_slice %270 {offsets = [2, 0, 0], sizes = [1, 8, 128], strides = [1, 1, 1]} : vector<3x8x128xf32> to vector<1x8x128xf32>
    %297 = vector.shape_cast %296 : vector<1x8x128xf32> to vector<8x128xf32>
    %298 = arith.mulf %287, %279 : vector<8x128xf32>
    %299 = arith.addf %297, %298 : vector<8x128xf32>
    %300 = math.tanh %299 : vector<8x128xf32>
    %cst_92 = arith.constant 1.000000e+00 : f32
    %301 = vector.broadcast %cst_92 : f32 to vector<8x128xf32>
    %302 = arith.subf %301, %295 : vector<8x128xf32>
    %303 = arith.mulf %302, %300 : vector<8x128xf32>
    %304 = arith.mulf %295, %263 : vector<8x128xf32>
    %305 = arith.addf %303, %304 : vector<8x128xf32>
    %306 = arith.index_cast %c6_i32 : i32 to index
    %c0_93 = arith.constant 0 : index
    %c0_94 = arith.constant 0 : index
    %307 = vector.load %arg4[%306, %c0_93, %c0_94] : memref<8x8x128xf32, #tpu.memory_space<vmem>>, vector<1x8x128xf32>
    %308 = vector.shape_cast %307 : vector<1x8x128xf32> to vector<8x128xf32>
    %309 = vector.shape_cast %305 : vector<8x128xf32> to vector<1x8x128xf32>
    tpu.vector_store %arg4[%306, %c0_93, %c0_94], %309 {strides = array<i32>} : memref<8x8x128xf32, #tpu.memory_space<vmem>>, vector<1x8x128xf32>,
    %c7_i32 = arith.constant 7 : i32
    %310 = arith.index_cast %c7_i32 : i32 to index
    %c0_95 = arith.constant 0 : index
    %c0_96 = arith.constant 0 : index
    %c0_97 = arith.constant 0 : index
    %311 = vector.load %arg1[%310, %c0_95, %c0_96, %c0_97] : memref<8x3x8x128xf32, #tpu.memory_space<vmem>>, vector<1x3x8x128xf32>
    %312 = vector.shape_cast %311 : vector<1x3x8x128xf32> to vector<3x8x128xf32>
    %cst_98 = arith.constant dense<0.000000e+00> : vector<8x128xf32>
    %313 = tpu.matmul %305, %4, %cst_98 {dimension_numbers = #tpu.dot_dimension_numbers<[1], [0], [0], [1], [0, 0, 1, 1], [], []>} : vector<8x128xf32>, vector<128x128xf32>, vector<8x128xf32> -> vector<8x128xf32>
    %314 = vector.broadcast %10 : vector<1x128xf32> to vector<8x128xf32>
    %315 = arith.addf %313, %314 : vector<8x128xf32>
    %cst_99 = arith.constant dense<0.000000e+00> : vector<8x128xf32>
    %316 = tpu.matmul %305, %6, %cst_99 {dimension_numbers = #tpu.dot_dimension_numbers<[1], [0], [0], [1], [0, 0, 1, 1], [], []>} : vector<8x128xf32>, vector<128x128xf32>, vector<8x128xf32> -> vector<8x128xf32>
    %317 = vector.broadcast %12 : vector<1x128xf32> to vector<8x128xf32>
    %318 = arith.addf %316, %317 : vector<8x128xf32>
    %cst_100 = arith.constant dense<0.000000e+00> : vector<8x128xf32>
    %319 = tpu.matmul %305, %8, %cst_100 {dimension_numbers = #tpu.dot_dimension_numbers<[1], [0], [0], [1], [0, 0, 1, 1], [], []>} : vector<8x128xf32>, vector<128x128xf32>, vector<8x128xf32> -> vector<8x128xf32>
    %320 = vector.broadcast %14 : vector<1x128xf32> to vector<8x128xf32>
    %321 = arith.addf %319, %320 : vector<8x128xf32>
    %322 = vector.extract_strided_slice %312 {offsets = [0, 0, 0], sizes = [1, 8, 128], strides = [1, 1, 1]} : vector<3x8x128xf32> to vector<1x8x128xf32>
    %323 = vector.shape_cast %322 : vector<1x8x128xf32> to vector<8x128xf32>
    %324 = arith.addf %323, %315 : vector<8x128xf32>
    %325 = arith.negf %324 : vector<8x128xf32>
    %326 = math.exp %325 : vector<8x128xf32>
    %cst_101 = arith.constant 1.000000e+00 : f32
    %327 = vector.broadcast %cst_101 : f32 to vector<8x128xf32>
    %328 = arith.addf %327, %326 : vector<8x128xf32>
    %329 = arith.divf %327, %328 : vector<8x128xf32>
    %330 = vector.extract_strided_slice %312 {offsets = [1, 0, 0], sizes = [1, 8, 128], strides = [1, 1, 1]} : vector<3x8x128xf32> to vector<1x8x128xf32>
    %331 = vector.shape_cast %330 : vector<1x8x128xf32> to vector<8x128xf32>
    %332 = arith.addf %331, %318 : vector<8x128xf32>
    %333 = arith.negf %332 : vector<8x128xf32>
    %334 = math.exp %333 : vector<8x128xf32>
    %cst_102 = arith.constant 1.000000e+00 : f32
    %335 = vector.broadcast %cst_102 : f32 to vector<8x128xf32>
    %336 = arith.addf %335, %334 : vector<8x128xf32>
    %337 = arith.divf %335, %336 : vector<8x128xf32>
    %338 = vector.extract_strided_slice %312 {offsets = [2, 0, 0], sizes = [1, 8, 128], strides = [1, 1, 1]} : vector<3x8x128xf32> to vector<1x8x128xf32>
    %339 = vector.shape_cast %338 : vector<1x8x128xf32> to vector<8x128xf32>
    %340 = arith.mulf %329, %321 : vector<8x128xf32>
    %341 = arith.addf %339, %340 : vector<8x128xf32>
    %342 = math.tanh %341 : vector<8x128xf32>
    %cst_103 = arith.constant 1.000000e+00 : f32
    %343 = vector.broadcast %cst_103 : f32 to vector<8x128xf32>
    %344 = arith.subf %343, %337 : vector<8x128xf32>
    %345 = arith.mulf %344, %342 : vector<8x128xf32>
    %346 = arith.mulf %337, %305 : vector<8x128xf32>
    %347 = arith.addf %345, %346 : vector<8x128xf32>
    %348 = arith.index_cast %c7_i32 : i32 to index
    %c0_104 = arith.constant 0 : index
    %c0_105 = arith.constant 0 : index
    %349 = vector.load %arg4[%348, %c0_104, %c0_105] : memref<8x8x128xf32, #tpu.memory_space<vmem>>, vector<1x8x128xf32>
    %350 = vector.shape_cast %349 : vector<1x8x128xf32> to vector<8x128xf32>
    %351 = vector.shape_cast %347 : vector<8x128xf32> to vector<1x8x128xf32>
    tpu.vector_store %arg4[%348, %c0_104, %c0_105], %351 {strides = array<i32>} : memref<8x8x128xf32, #tpu.memory_space<vmem>>, vector<1x8x128xf32>,
    %c8_i32 = arith.constant 8 : i32
    %c0_106 = arith.constant 0 : index
    %c0_107 = arith.constant 0 : index
    %352 = vector.load %arg5[%c0_106, %c0_107] : memref<8x128xf32, #tpu.memory_space<vmem>>, vector<8x128xf32>
    tpu.vector_store %arg5[%c0_106, %c0_107], %347 {strides = array<i32>} : memref<8x128xf32, #tpu.memory_space<vmem>>, vector<8x128xf32>,
    return
  }
  func.func @transform_0(%arg0: i32) -> (i32, i32, i32, i32) {
    %c0_i32 = arith.constant 0 : i32
    %c0_i32_0 = arith.constant 0 : i32
    %c0_i32_1 = arith.constant 0 : i32
    %c0_i32_2 = arith.constant 0 : i32
    return %arg0, %c0_i32, %c0_i32_0, %c0_i32_1 : i32, i32, i32, i32
  }
  func.func @transform_1(%arg0: i32) -> (i32, i32, i32) {
    %c0_i32 = arith.constant 0 : i32
    %c0_i32_0 = arith.constant 0 : i32
    %c0_i32_1 = arith.constant 0 : i32
    %c0_i32_2 = arith.constant 0 : i32
    return %c0_i32, %c0_i32_0, %c0_i32_1 : i32, i32, i32
  }
  func.func @transform_2(%arg0: i32) -> (i32, i32, i32) {
    %c0_i32 = arith.constant 0 : i32
    %c0_i32_0 = arith.constant 0 : i32
    %c0_i32_1 = arith.constant 0 : i32
    %c0_i32_2 = arith.constant 0 : i32
    return %c0_i32, %c0_i32_0, %c0_i32_1 : i32, i32, i32
  }
  func.func @transform_3(%arg0: i32) -> (i32, i32, i32) {
    %c0_i32 = arith.constant 0 : i32
    %c0_i32_0 = arith.constant 0 : i32
    %c0_i32_1 = arith.constant 0 : i32
    return %arg0, %c0_i32, %c0_i32_0 : i32, i32, i32
  }
}

</mosaic_0001>

<llo_original>
// kernel: gru_encoder_forward.1
$region0: #{gru_encoder_forward.1}
  #allocation0 [shape = 'u32[]', space=smem, size = 0x4, offset = 0x4, fixed_abs, tag = 'smem constant byte address 0x4 - core index']
  #allocation1 [shape = 'u32[144,128]{1,0:T(1,128)}', space=vmem, size = 0x12000, scoped, tag = 'internal scratch']
  #allocation2 [shape = 'f32[8,128]{1,0:T(8,128)}', space=vmem, size = 0x1000, scoped, tag = 'scratch operand']
  %s0 = inlined_call_operand.vmem [shape: f32[8,3,8,128], index: 0, kind: input, shape index: {}]
  %s1 = inlined_call_operand.vmem [shape: f32[3,128,128], index: 1, kind: input, shape index: {}]
  %s2 = inlined_call_operand.vmem [shape: f32[3,1,128], index: 2, kind: input, shape index: {}]
  %s3 = inlined_call_operand.vmem [shape: f32[8,8,128], index: 3, kind: output, shape index: {}]
  %s4 = sld [smem:[#allocation0]]
  $region26: #{gru_encoder_forward.1} parent=0
    _
  %s6 = ssub.s32 1, %s4
  %s7 = scalar_select 0, %s6, %s4
  // Predicated region
  $region2: #{gru_encoder_forward.1} parent=0 // pred_check
    _
  $region3: #{gru_encoder_forward.1} parent=0 // pred_check_branch
    %9 = sbr.rel (0) target = $region5
  $region4: #{gru_encoder_forward.1} parent=0 // pred_region
    _
  $region5: #{gru_encoder_forward.1} parent=0 // pred_fallthru
    _
  // Predicated region
  $region6: #{gru_encoder_forward.1} parent=0 // pred_check
    _
  $region7: #{gru_encoder_forward.1} parent=0 // pred_check_branch
    %11 = sbr.rel (0) target = $region9
  $region8: #{gru_encoder_forward.1} parent=0 // pred_region
    _
  $region9: #{gru_encoder_forward.1} parent=0 // pred_fallthru
    _
  // Predicated region
  $region10: #{gru_encoder_forward.1} parent=0 // pred_check
    _
  $region11: #{gru_encoder_forward.1} parent=0 // pred_check_branch
    %13 = sbr.rel (0) target = $region13
  $region12: #{gru_encoder_forward.1} parent=0 // pred_region
    _
  $region13: #{gru_encoder_forward.1} parent=0 // pred_fallthru
    _
  %p14 = scmp.eq.s32.totalorder 0, 0
  // Predicated region
  $region14: #{gru_encoder_forward.1} parent=0 // pred_check
    %p15 = pneg %p14
  $region15: #{gru_encoder_forward.1} parent=0 // pred_check_branch
    %17 = sbr.rel (%p15) target = $region17
  $region16: #{gru_encoder_forward.1} parent=0 // pred_region
    %18 = vst [vmem:[#allocation2] sm:$0xff] 0.0
  $region17: #{gru_encoder_forward.1} parent=0 // pred_fallthru
    _
  %v19 = vld [vmem:[%s1] sm:$0xff]
  %v20 = vld [vmem:[%s1 + $0x8] sm:$0xff]
  %v21 = vld [vmem:[%s1 + $0x10] sm:$0xff]
  %v22 = vld [vmem:[%s1 + $0x18] sm:$0xff]
  %v23 = vld [vmem:[%s1 + $0x20] sm:$0xff]
  %v24 = vld [vmem:[%s1 + $0x28] sm:$0xff]
  %v25 = vld [vmem:[%s1 + $0x30] sm:$0xff]
  %v26 = vld [vmem:[%s1 + $0x38] sm:$0xff]
  %v27 = vld [vmem:[%s1 + $0x40] sm:$0xff]
  %v28 = vld [vmem:[%s1 + $0x48] sm:$0xff]
  %v29 = vld [vmem:[%s1 + $0x50] sm:$0xff]
  %v30 = vld [vmem:[%s1 + $0x58] sm:$0xff]
  %v31 = vld [vmem:[%s1 + $0x60] sm:$0xff]
  %v32 = vld [vmem:[%s1 + $0x68] sm:$0xff]
  %v33 = vld [vmem:[%s1 + $0x70] sm:$0xff]
  %v34 = vld [vmem:[%s1 + $0x78] sm:$0xff]
  %s35 = scalar_lea.vmem %s1, 128
  %v36 = vld [vmem:[%s35] sm:$0xff]
  %v37 = vld [vmem:[%s35 + $0x8] sm:$0xff]
  %v38 = vld [vmem:[%s35 + $0x10] sm:$0xff]
  %v39 = vld [vmem:[%s35 + $0x18] sm:$0xff]
  %v40 = vld [vmem:[%s35 + $0x20] sm:$0xff]
  %v41 = vld [vmem:[%s35 + $0x28] sm:$0xff]
  %v42 = vld [vmem:[%s35 + $0x30] sm:$0xff]
  %v43 = vld [vmem:[%s35 + $0x38] sm:$0xff]
  %v44 = vld [vmem:[%s35 + $0x40] sm:$0xff]
  %v45 = vld [vmem:[%s35 + $0x48] sm:$0xff]
  %v46 = vld [vmem:[%s35 + $0x50] sm:$0xff]
  %v47 = vld [vmem:[%s35 + $0x58] sm:$0xff]
  %v48 = vld [vmem:[%s35 + $0x60] sm:$0xff]
  %v49 = vld [vmem:[%s35 + $0x68] sm:$0xff]
  %v50 = vld [vmem:[%s35 + $0x70] sm:$0xff]
  %v51 = vld [vmem:[%s35 + $0x78] sm:$0xff]
  %s52 = scalar_lea.vmem %s1, 256
  %v53 = vld [vmem:[%s52] sm:$0xff]
  %v54 = vld [vmem:[%s52 + $0x8] sm:$0xff]
  %v55 = vld [vmem:[%s52 + $0x10] sm:$0xff]
  %v56 = vld [vmem:[%s52 + $0x18] sm:$0xff]
  %v57 = vld [vmem:[%s52 + $0x20] sm:$0xff]
  %v58 = vld [vmem:[%s52 + $0x28] sm:$0xff]
  %v59 = vld [vmem:[%s52 + $0x30] sm:$0xff]
  %v60 = vld [vmem:[%s52 + $0x38] sm:$0xff]
  %v61 = vld [vmem:[%s52 + $0x40] sm:$0xff]
  %v62 = vld [vmem:[%s52 + $0x48] sm:$0xff]
  %v63 = vld [vmem:[%s52 + $0x50] sm:$0xff]
  %v64 = vld [vmem:[%s52 + $0x58] sm:$0xff]
  %v65 = vld [vmem:[%s52 + $0x60] sm:$0xff]
  %v66 = vld [vmem:[%s52 + $0x68] sm:$0xff]
  %v67 = vld [vmem:[%s52 + $0x70] sm:$0xff]
  %v68 = vld [vmem:[%s52 + $0x78] sm:$0xff]
  %v69 = vld [vmem:[%s2] sm:$0x1]
  %s70 = scalar_lea.vmem %s2, 1
  %v71 = vld [vmem:[%s70] sm:$0x1]
  %s72 = scalar_lea.vmem %s2, 2
  %v73 = vld [vmem:[%s72] sm:$0x1]
  %v74 = vld [vmem:[#allocation2] sm:$0xff]
  %v75 = vld [vmem:[%s0] sm:$0xff]
  %v76 = vld [vmem:[%s0 + $0x8] sm:$0xff]
  %v77 = vld [vmem:[%s0 + $0x10] sm:$0xff]
  %v79 = vlaneseq
  %v80 = vshrl.u32 %v79, 7
  %v81 = vsub.s32 0, %v80
  %v82 = vrot.slane %v69, %v81
  %84 = vmatprep.subr.mxu0 0.0
  %85 = vmatpush1.msra.mxu0 %v19
  %86 = vmatprep.subr.mxu0 0.0
  %87 = vmatpush1.msra.mxu0 %v20
  %88 = vmatprep.subr.mxu0 0.0
  %89 = vmatpush1.msra.mxu0 %v21
  %90 = vmatprep.subr.mxu0 0.0
  %91 = vmatpush1.msra.mxu0 %v22
  %92 = vmatprep.subr.mxu0 0.0
  %93 = vmatpush1.msra.mxu0 %v23
  %94 = vmatprep.subr.mxu0 0.0
  %95 = vmatpush1.msra.mxu0 %v24
  %96 = vmatprep.subr.mxu0 0.0
  %97 = vmatpush1.msra.mxu0 %v25
  %98 = vmatprep.subr.mxu0 0.0
  %99 = vmatpush1.msra.mxu0 %v26
  %100 = vmatprep.subr.mxu0 0.0
  %101 = vmatpush1.msra.mxu0 %v27
  %102 = vmatprep.subr.mxu0 0.0
  %103 = vmatpush1.msra.mxu0 %v28
  %104 = vmatprep.subr.mxu0 0.0
  %105 = vmatpush1.msra.mxu0 %v29
  %106 = vmatprep.subr.mxu0 0.0
  %107 = vmatpush1.msra.mxu0 %v30
  %108 = vmatprep.subr.mxu0 0.0
  %109 = vmatpush1.msra.mxu0 %v31
  %110 = vmatprep.subr.mxu0 0.0
  %111 = vmatpush1.msra.mxu0 %v32
  %112 = vmatprep.subr.mxu0 0.0
  %113 = vmatpush1.msra.mxu0 %v33
  %114 = vmatprep.subr.mxu0 0.0
  %115 = vmatpush1.msra.mxu0 %v34
  %116 = vmatprep.subr.mxu0 0.0
  %117 = vmatpush1.msra.mxu0 0.0
  %118 = vmatprep.subr.mxu0 0.0
  %119 = vmatpush1.msra.mxu0 0.0
  %120 = vmatprep.subr.mxu0 0.0
  %121 = vmatpush1.msra.mxu0 0.0
  %122 = vmatprep.subr.mxu0 0.0
  %123 = vmatpush1.msra.mxu0 0.0
  %124 = vmatprep.subr.mxu0 0.0
  %125 = vmatpush1.msra.mxu0 0.0
  %126 = vmatprep.subr.mxu0 0.0
  %127 = vmatpush1.msra.mxu0 0.0
  %128 = vmatprep.subr.mxu0 0.0
  %129 = vmatpush1.msra.mxu0 0.0
  %130 = vmatprep.subr.mxu0 0.0
  %131 = vmatpush1.msra.mxu0 0.0
  %132 = vmatprep.subr.mxu0 0.0
  %133 = vmatpush1.msra.mxu0 0.0
  %134 = vmatprep.subr.mxu0 0.0
  %135 = vmatpush1.msra.mxu0 0.0
  %136 = vmatprep.subr.mxu0 0.0
  %137 = vmatpush1.msra.mxu0 0.0
  %138 = vmatprep.subr.mxu0 0.0
  %139 = vmatpush1.msra.mxu0 0.0
  %140 = vmatprep.subr.mxu0 0.0
  %141 = vmatpush1.msra.mxu0 0.0
  %142 = vmatprep.subr.mxu0 0.0
  %143 = vmatpush1.msra.mxu0 0.0
  %144 = vmatprep.subr.mxu0 0.0
  %145 = vmatpush1.msra.mxu0 0.0
  %146 = vmatprep.subr.mxu0 0.0
  %147 = vmatpush1.msra.mxu0 0.0
  %148 = vmatprep.mubr.f32.mxu0 0.0
  %149 = vmatmul.mubr.f32.gmra.mrb[0].mxu0 %v74
  %v150 = vpop.f32.mrb[0].mxu0
  %v151 = vadd.f32 %v82, %v150
  %v152 = vpop.f32.mrb[0].mxu0
  %153 = vdwg.mxu0
  %v155 = vlaneseq
  %v156 = vshrl.u32 %v155, 7
  %v157 = vsub.s32 0, %v156
  %v158 = vrot.slane %v71, %v157
  %160 = vmatprep.subr.mxu0 0.0
  %161 = vmatpush1.msra.mxu0 %v36
  %162 = vmatprep.subr.mxu0 0.0
  %163 = vmatpush1.msra.mxu0 %v37
  %164 = vmatprep.subr.mxu0 0.0
  %165 = vmatpush1.msra.mxu0 %v38
  %166 = vmatprep.subr.mxu0 0.0
  %167 = vmatpush1.msra.mxu0 %v39
  %168 = vmatprep.subr.mxu0 0.0
  %169 = vmatpush1.msra.mxu0 %v40
  %170 = vmatprep.subr.mxu0 0.0
  %171 = vmatpush1.msra.mxu0 %v41
  %172 = vmatprep.subr.mxu0 0.0
  %173 = vmatpush1.msra.mxu0 %v42
  %174 = vmatprep.subr.mxu0 0.0
  %175 = vmatpush1.msra.mxu0 %v43
  %176 = vmatprep.subr.mxu0 0.0
  %177 = vmatpush1.msra.mxu0 %v44
  %178 = vmatprep.subr.mxu0 0.0
  %179 = vmatpush1.msra.mxu0 %v45
  %180 = vmatprep.subr.mxu0 0.0
  %181 = vmatpush1.msra.mxu0 %v46
  %182 = vmatprep.subr.mxu0 0.0
  %183 = vmatpush1.msra.mxu0 %v47
  %184 = vmatprep.subr.mxu0 0.0
  %185 = vmatpush1.msra.mxu0 %v48
  %186 = vmatprep.subr.mxu0 0.0
  %187 = vmatpush1.msra.mxu0 %v49
  %188 = vmatprep.subr.mxu0 0.0
  %189 = vmatpush1.msra.mxu0 %v50
  %190 = vmatprep.subr.mxu0 0.0
  %191 = vmatpush1.msra.mxu0 %v51
  %192 = vmatprep.subr.mxu0 0.0
  %193 = vmatpush1.msra.mxu0 0.0
  %194 = vmatprep.subr.mxu0 0.0
  %195 = vmatpush1.msra.mxu0 0.0
  %196 = vmatprep.subr.mxu0 0.0
  %197 = vmatpush1.msra.mxu0 0.0
  %198 = vmatprep.subr.mxu0 0.0
  %199 = vmatpush1.msra.mxu0 0.0
  %200 = vmatprep.subr.mxu0 0.0
  %201 = vmatpush1.msra.mxu0 0.0
  %202 = vmatprep.subr.mxu0 0.0
  %203 = vmatpush1.msra.mxu0 0.0
  %204 = vmatprep.subr.mxu0 0.0
  %205 = vmatpush1.msra.mxu0 0.0
  %206 = vmatprep.subr.mxu0 0.0
  %207 = vmatpush1.msra.mxu0 0.0
  %208 = vmatprep.subr.mxu0 0.0
  %209 = vmatpush1.msra.mxu0 0.0
  %210 = vmatprep.subr.mxu0 0.0
  %211 = vmatpush1.msra.mxu0 0.0
  %212 = vmatprep.subr.mxu0 0.0
  %213 = vmatpush1.msra.mxu0 0.0
  %214 = vmatprep.subr.mxu0 0.0
  %215 = vmatpush1.msra.mxu0 0.0
  %216 = vmatprep.subr.mxu0 0.0
  %217 = vmatpush1.msra.mxu0 0.0
  %218 = vmatprep.subr.mxu0 0.0
  %219 = vmatpush1.msra.mxu0 0.0
  %220 = vmatprep.subr.mxu0 0.0
  %221 = vmatpush1.msra.mxu0 0.0
  %222 = vmatprep.subr.mxu0 0.0
  %223 = vmatpush1.msra.mxu0 0.0
  %224 = vmatprep.mubr.f32.mxu0 0.0
  %225 = vmatmul.mubr.f32.gmra.mrb[0].mxu0 %v74
  %v226 = vpop.f32.mrb[0].mxu0
  %v227 = vadd.f32 %v158, %v226
  %v228 = vpop.f32.mrb[0].mxu0
  %229 = vdwg.mxu0
  %v231 = vlaneseq
  %v232 = vshrl.u32 %v231, 7
  %v233 = vsub.s32 0, %v232
  %v234 = vrot.slane %v73, %v233
  %236 = vmatprep.subr.mxu0 0.0
  %237 = vmatpush1.msra.mxu0 %v53
  %238 = vmatprep.subr.mxu0 0.0
  %239 = vmatpush1.msra.mxu0 %v54
  %240 = vmatprep.subr.mxu0 0.0
  %241 = vmatpush1.msra.mxu0 %v55
  %242 = vmatprep.subr.mxu0 0.0
  %243 = vmatpush1.msra.mxu0 %v56
  %244 = vmatprep.subr.mxu0 0.0
  %245 = vmatpush1.msra.mxu0 %v57
  %246 = vmatprep.subr.mxu0 0.0
  %247 = vmatpush1.msra.mxu0 %v58
  %248 = vmatprep.subr.mxu0 0.0
  %249 = vmatpush1.msra.mxu0 %v59
  %250 = vmatprep.subr.mxu0 0.0
  %251 = vmatpush1.msra.mxu0 %v60
  %252 = vmatprep.subr.mxu0 0.0
  %253 = vmatpush1.msra.mxu0 %v61
  %254 = vmatprep.subr.mxu0 0.0
  %255 = vmatpush1.msra.mxu0 %v62
  %256 = vmatprep.subr.mxu0 0.0
  %257 = vmatpush1.msra.mxu0 %v63
  %258 = vmatprep.subr.mxu0 0.0
  %259 = vmatpush1.msra.mxu0 %v64
  %260 = vmatprep.subr.mxu0 0.0
  %261 = vmatpush1.msra.mxu0 %v65
  %262 = vmatprep.subr.mxu0 0.0
  %263 = vmatpush1.msra.mxu0 %v66
  %264 = vmatprep.subr.mxu0 0.0
  %265 = vmatpush1.msra.mxu0 %v67
  %266 = vmatprep.subr.mxu0 0.0
  %267 = vmatpush1.msra.mxu0 %v68
  %268 = vmatprep.subr.mxu0 0.0
  %269 = vmatpush1.msra.mxu0 0.0
  %270 = vmatprep.subr.mxu0 0.0
  %271 = vmatpush1.msra.mxu0 0.0
  %272 = vmatprep.subr.mxu0 0.0
  %273 = vmatpush1.msra.mxu0 0.0
  %274 = vmatprep.subr.mxu0 0.0
  %275 = vmatpush1.msra.mxu0 0.0
  %276 = vmatprep.subr.mxu0 0.0
  %277 = vmatpush1.msra.mxu0 0.0
  %278 = vmatprep.subr.mxu0 0.0
  %279 = vmatpush1.msra.mxu0 0.0
  %280 = vmatprep.subr.mxu0 0.0
  %281 = vmatpush1.msra.mxu0 0.0
  %282 = vmatprep.subr.mxu0 0.0
  %283 = vmatpush1.msra.mxu0 0.0
  %284 = vmatprep.subr.mxu0 0.0
  %285 = vmatpush1.msra.mxu0 0.0
  %286 = vmatprep.subr.mxu0 0.0
  %287 = vmatpush1.msra.mxu0 0.0
  %288 = vmatprep.subr.mxu0 0.0
  %289 = vmatpush1.msra.mxu0 0.0
  %290 = vmatprep.subr.mxu0 0.0
  %291 = vmatpush1.msra.mxu0 0.0
  %292 = vmatprep.subr.mxu0 0.0
  %293 = vmatpush1.msra.mxu0 0.0
  %294 = vmatprep.subr.mxu0 0.0
  %295 = vmatpush1.msra.mxu0 0.0
  %296 = vmatprep.subr.mxu0 0.0
  %297 = vmatpush1.msra.mxu0 0.0
  %298 = vmatprep.subr.mxu0 0.0
  %299 = vmatpush1.msra.mxu0 0.0
  %300 = vmatprep.mubr.f32.mxu0 0.0
  %301 = vmatmul.mubr.f32.gmra.mrb[0].mxu0 %v74
  %v302 = vpop.f32.mrb[0].mxu0
  %v303 = vadd.f32 %v234, %v302
  %v304 = vpop.f32.mrb[0].mxu0
  %305 = vdwg.mxu0
  %v306 = vadd.f32 %v75, %v151
  %v307 = vxor.u32 %v306, 2147483648
  %v308 = vmul.f32 %v307, 1.442695
  %v309 = vpow.pop %v308
  %v310 = vadd.f32 %v309, 1.0
  %v311 = vrcp.pop %v310
  %v312 = vmul.f32 1.0, %v311
  %v313 = vadd.f32 %v76, %v227
  %v314 = vxor.u32 %v313, 2147483648
  %v315 = vmul.f32 %v314, 1.442695
  %v316 = vpow.pop %v315
  %v317 = vadd.f32 %v316, 1.0
  %v318 = vrcp.pop %v317
  %v319 = vmul.f32 1.0, %v318
  %v320 = vmul.f32 %v312, %v303
  %v321 = vadd.f32 %v77, %v320
  %v322 = vtanh.pop %v321
  %v323 = vsub.f32 1.0, %v319
  %v324 = vmul.f32 %v323, %v322
  %v325 = vmul.f32 %v319, %v74
  %v326 = vadd.f32 %v324, %v325
  %327 = vst [vmem:[%s3] sm:$0xff] %v326
  %s328 = scalar_lea.vmem %s0, 24
  %v329 = vld [vmem:[%s328] sm:$0xff]
  %v330 = vld [vmem:[%s328 + $0x8] sm:$0xff]
  %v331 = vld [vmem:[%s328 + $0x10] sm:$0xff]
  %332 = vmatprep.subr.mxu0 0.0
  %333 = vmatpush1.msra.mxu0 %v19
  %334 = vmatprep.subr.mxu0 0.0
  %335 = vmatpush1.msra.mxu0 %v20
  %336 = vmatprep.subr.mxu0 0.0
  %337 = vmatpush1.msra.mxu0 %v21
  %338 = vmatprep.subr.mxu0 0.0
  %339 = vmatpush1.msra.mxu0 %v22
  %340 = vmatprep.subr.mxu0 0.0
  %341 = vmatpush1.msra.mxu0 %v23
  %342 = vmatprep.subr.mxu0 0.0
  %343 = vmatpush1.msra.mxu0 %v24
  %344 = vmatprep.subr.mxu0 0.0
  %345 = vmatpush1.msra.mxu0 %v25
  %346 = vmatprep.subr.mxu0 0.0
  %347 = vmatpush1.msra.mxu0 %v26
  %348 = vmatprep.subr.mxu0 0.0
  %349 = vmatpush1.msra.mxu0 %v27
  %350 = vmatprep.subr.mxu0 0.0
  %351 = vmatpush1.msra.mxu0 %v28
  %352 = vmatprep.subr.mxu0 0.0
  %353 = vmatpush1.msra.mxu0 %v29
  %354 = vmatprep.subr.mxu0 0.0
  %355 = vmatpush1.msra.mxu0 %v30
  %356 = vmatprep.subr.mxu0 0.0
  %357 = vmatpush1.msra.mxu0 %v31
  %358 = vmatprep.subr.mxu0 0.0
  %359 = vmatpush1.msra.mxu0 %v32
  %360 = vmatprep.subr.mxu0 0.0
  %361 = vmatpush1.msra.mxu0 %v33
  %362 = vmatprep.subr.mxu0 0.0
  %363 = vmatpush1.msra.mxu0 %v34
  %364 = vmatprep.subr.mxu0 0.0
  %365 = vmatpush1.msra.mxu0 0.0
  %366 = vmatprep.subr.mxu0 0.0
  %367 = vmatpush1.msra.mxu0 0.0
  %368 = vmatprep.subr.mxu0 0.0
  %369 = vmatpush1.msra.mxu0 0.0
  %370 = vmatprep.subr.mxu0 0.0
  %371 = vmatpush1.msra.mxu0 0.0
  %372 = vmatprep.subr.mxu0 0.0
  %373 = vmatpush1.msra.mxu0 0.0
  %374 = vmatprep.subr.mxu0 0.0
  %375 = vmatpush1.msra.mxu0 0.0
  %376 = vmatprep.subr.mxu0 0.0
  %377 = vmatpush1.msra.mxu0 0.0
  %378 = vmatprep.subr.mxu0 0.0
  %379 = vmatpush1.msra.mxu0 0.0
  %380 = vmatprep.subr.mxu0 0.0
  %381 = vmatpush1.msra.mxu0 0.0
  %382 = vmatprep.subr.mxu0 0.0
  %383 = vmatpush1.msra.mxu0 0.0
  %384 = vmatprep.subr.mxu0 0.0
  %385 = vmatpush1.msra.mxu0 0.0
  %386 = vmatprep.subr.mxu0 0.0
  %387 = vmatpush1.msra.mxu0 0.0
  %388 = vmatprep.subr.mxu0 0.0
  %389 = vmatpush1.msra.mxu0 0.0
  %390 = vmatprep.subr.mxu0 0.0
  %391 = vmatpush1.msra.mxu0 0.0
  %392 = vmatprep.subr.mxu0 0.0
  %393 = vmatpush1.msra.mxu0 0.0
  %394 = vmatprep.subr.mxu0 0.0
  %395 = vmatpush1.msra.mxu0 0.0
  %396 = vmatprep.mubr.f32.mxu0 0.0
  %397 = vmatmul.mubr.f32.gmra.mrb[0].mxu0 %v326
  %v398 = vpop.f32.mrb[0].mxu0
  %v399 = vadd.f32 %v82, %v398
  %v400 = vpop.f32.mrb[0].mxu0
  %401 = vdwg.mxu0
  %402 = vmatprep.subr.mxu0 0.0
  %403 = vmatpush1.msra.mxu0 %v36
  %404 = vmatprep.subr.mxu0 0.0
  %405 = vmatpush1.msra.mxu0 %v37
  %406 = vmatprep.subr.mxu0 0.0
  %407 = vmatpush1.msra.mxu0 %v38
  %408 = vmatprep.subr.mxu0 0.0
  %409 = vmatpush1.msra.mxu0 %v39
  %410 = vmatprep.subr.mxu0 0.0
  %411 = vmatpush1.msra.mxu0 %v40
  %412 = vmatprep.subr.mxu0 0.0
  %413 = vmatpush1.msra.mxu0 %v41
  %414 = vmatprep.subr.mxu0 0.0
  %415 = vmatpush1.msra.mxu0 %v42
  %416 = vmatprep.subr.mxu0 0.0
  %417 = vmatpush1.msra.mxu0 %v43
  %418 = vmatprep.subr.mxu0 0.0
  %419 = vmatpush1.msra.mxu0 %v44
  %420 = vmatprep.subr.mxu0 0.0
  %421 = vmatpush1.msra.mxu0 %v45
  %422 = vmatprep.subr.mxu0 0.0
  %423 = vmatpush1.msra.mxu0 %v46
  %424 = vmatprep.subr.mxu0 0.0
  %425 = vmatpush1.msra.mxu0 %v47
  %426 = vmatprep.subr.mxu0 0.0
  %427 = vmatpush1.msra.mxu0 %v48
  %428 = vmatprep.subr.mxu0 0.0
  %429 = vmatpush1.msra.mxu0 %v49
  %430 = vmatprep.subr.mxu0 0.0
  %431 = vmatpush1.msra.mxu0 %v50
  %432 = vmatprep.subr.mxu0 0.0
  %433 = vmatpush1.msra.mxu0 %v51
  %434 = vmatprep.subr.mxu0 0.0
  %435 = vmatpush1.msra.mxu0 0.0
  %436 = vmatprep.subr.mxu0 0.0
  %437 = vmatpush1.msra.mxu0 0.0
  %438 = vmatprep.subr.mxu0 0.0
  %439 = vmatpush1.msra.mxu0 0.0
  %440 = vmatprep.subr.mxu0 0.0
  %441 = vmatpush1.msra.mxu0 0.0
  %442 = vmatprep.subr.mxu0 0.0
  %443 = vmatpush1.msra.mxu0 0.0
  %444 = vmatprep.subr.mxu0 0.0
  %445 = vmatpush1.msra.mxu0 0.0
  %446 = vmatprep.subr.mxu0 0.0
  %447 = vmatpush1.msra.mxu0 0.0
  %448 = vmatprep.subr.mxu0 0.0
  %449 = vmatpush1.msra.mxu0 0.0
  %450 = vmatprep.subr.mxu0 0.0
  %451 = vmatpush1.msra.mxu0 0.0
  %452 = vmatprep.subr.mxu0 0.0
  %453 = vmatpush1.msra.mxu0 0.0
  %454 = vmatprep.subr.mxu0 0.0
  %455 = vmatpush1.msra.mxu0 0.0
  %456 = vmatprep.subr.mxu0 0.0
  %457 = vmatpush1.msra.mxu0 0.0
  %458 = vmatprep.subr.mxu0 0.0
  %459 = vmatpush1.msra.mxu0 0.0
  %460 = vmatprep.subr.mxu0 0.0
  %461 = vmatpush1.msra.mxu0 0.0
  %462 = vmatprep.subr.mxu0 0.0
  %463 = vmatpush1.msra.mxu0 0.0
  %464 = vmatprep.subr.mxu0 0.0
  %465 = vmatpush1.msra.mxu0 0.0
  %466 = vmatprep.mubr.f32.mxu0 0.0
  %467 = vmatmul.mubr.f32.gmra.mrb[0].mxu0 %v326
  %v468 = vpop.f32.mrb[0].mxu0
  %v469 = vadd.f32 %v158, %v468
  %v470 = vpop.f32.mrb[0].mxu0
  %471 = vdwg.mxu0
  %472 = vmatprep.subr.mxu0 0.0
  %473 = vmatpush1.msra.mxu0 %v53
  %474 = vmatprep.subr.mxu0 0.0
  %475 = vmatpush1.msra.mxu0 %v54
  %476 = vmatprep.subr.mxu0 0.0
  %477 = vmatpush1.msra.mxu0 %v55
  %478 = vmatprep.subr.mxu0 0.0
  %479 = vmatpush1.msra.mxu0 %v56
  %480 = vmatprep.subr.mxu0 0.0
  %481 = vmatpush1.msra.mxu0 %v57
  %482 = vmatprep.subr.mxu0 0.0
  %483 = vmatpush1.msra.mxu0 %v58
  %484 = vmatprep.subr.mxu0 0.0
  %485 = vmatpush1.msra.mxu0 %v59
  %486 = vmatprep.subr.mxu0 0.0
  %487 = vmatpush1.msra.mxu0 %v60
  %488 = vmatprep.subr.mxu0 0.0
  %489 = vmatpush1.msra.mxu0 %v61
  %490 = vmatprep.subr.mxu0 0.0
  %491 = vmatpush1.msra.mxu0 %v62
  %492 = vmatprep.subr.mxu0 0.0
  %493 = vmatpush1.msra.mxu0 %v63
  %494 = vmatprep.subr.mxu0 0.0
  %495 = vmatpush1.msra.mxu0 %v64
  %496 = vmatprep.subr.mxu0 0.0
  %497 = vmatpush1.msra.mxu0 %v65
  %498 = vmatprep.subr.mxu0 0.0
  %499 = vmatpush1.msra.mxu0 %v66
  %500 = vmatprep.subr.mxu0 0.0
  %501 = vmatpush1.msra.mxu0 %v67
  %502 = vmatprep.subr.mxu0 0.0
  %503 = vmatpush1.msra.mxu0 %v68
  %504 = vmatprep.subr.mxu0 0.0
  %505 = vmatpush1.msra.mxu0 0.0
  %506 = vmatprep.subr.mxu0 0.0
  %507 = vmatpush1.msra.mxu0 0.0
  %508 = vmatprep.subr.mxu0 0.0
  %509 = vmatpush1.msra.mxu0 0.0
  %510 = vmatprep.subr.mxu0 0.0
  %511 = vmatpush1.msra.mxu0 0.0
  %512 = vmatprep.subr.mxu0 0.0
  %513 = vmatpush1.msra.mxu0 0.0
  %514 = vmatprep.subr.mxu0 0.0
  %515 = vmatpush1.msra.mxu0 0.0
  %516 = vmatprep.subr.mxu0 0.0
  %517 = vmatpush1.msra.mxu0 0.0
  %518 = vmatprep.subr.mxu0 0.0
  %519 = vmatpush1.msra.mxu0 0.0
  %520 = vmatprep.subr.mxu0 0.0
  %521 = vmatpush1.msra.mxu0 0.0
  %522 = vmatprep.subr.mxu0 0.0
  %523 = vmatpush1.msra.mxu0 0.0
  %524 = vmatprep.subr.mxu0 0.0
  %525 = vmatpush1.msra.mxu0 0.0
  %526 = vmatprep.subr.mxu0 0.0
  %527 = vmatpush1.msra.mxu0 0.0
  %528 = vmatprep.subr.mxu0 0.0
  %529 = vmatpush1.msra.mxu0 0.0
  %530 = vmatprep.subr.mxu0 0.0
  %531 = vmatpush1.msra.mxu0 0.0
  %532 = vmatprep.subr.mxu0 0.0
  %533 = vmatpush1.msra.mxu0 0.0
  %534 = vmatprep.subr.mxu0 0.0
  %535 = vmatpush1.msra.mxu0 0.0
  %536 = vmatprep.mubr.f32.mxu0 0.0
  %537 = vmatmul.mubr.f32.gmra.mrb[0].mxu0 %v326
  %v538 = vpop.f32.mrb[0].mxu0
  %v539 = vadd.f32 %v234, %v538
  %v540 = vpop.f32.mrb[0].mxu0
  %541 = vdwg.mxu0
  %v542 = vadd.f32 %v329, %v399
  %v543 = vxor.u32 %v542, 2147483648
  %v544 = vmul.f32 %v543, 1.442695
  %v545 = vpow.pop %v544
  %v546 = vadd.f32 %v545, 1.0
  %v547 = vrcp.pop %v546
  %v548 = vmul.f32 1.0, %v547
  %v549 = vadd.f32 %v330, %v469
  %v550 = vxor.u32 %v549, 2147483648
  %v551 = vmul.f32 %v550, 1.442695
  %v552 = vpow.pop %v551
  %v553 = vadd.f32 %v552, 1.0
  %v554 = vrcp.pop %v553
  %v555 = vmul.f32 1.0, %v554
  %v556 = vmul.f32 %v548, %v539
  %v557 = vadd.f32 %v331, %v556
  %v558 = vtanh.pop %v557
  %v559 = vsub.f32 1.0, %v555
  %v560 = vmul.f32 %v559, %v558
  %v561 = vmul.f32 %v555, %v326
  %v562 = vadd.f32 %v560, %v561
  %s563 = scalar_lea.vmem %s3, 8
  %564 = vst [vmem:[%s563] sm:$0xff] %v562
  %s565 = scalar_lea.vmem %s0, 48
  %v566 = vld [vmem:[%s565] sm:$0xff]
  %v567 = vld [vmem:[%s565 + $0x8] sm:$0xff]
  %v568 = vld [vmem:[%s565 + $0x10] sm:$0xff]
  %569 = vmatprep.subr.mxu0 0.0
  %570 = vmatpush1.msra.mxu0 %v19
  %571 = vmatprep.subr.mxu0 0.0
  %572 = vmatpush1.msra.mxu0 %v20
  %573 = vmatprep.subr.mxu0 0.0
  %574 = vmatpush1.msra.mxu0 %v21
  %575 = vmatprep.subr.mxu0 0.0
  %576 = vmatpush1.msra.mxu0 %v22
  %577 = vmatprep.subr.mxu0 0.0
  %578 = vmatpush1.msra.mxu0 %v23
  %579 = vmatprep.subr.mxu0 0.0
  %580 = vmatpush1.msra.mxu0 %v24
  %581 = vmatprep.subr.mxu0 0.0
  %582 = vmatpush1.msra.mxu0 %v25
  %583 = vmatprep.subr.mxu0 0.0
  %584 = vmatpush1.msra.mxu0 %v26
  %585 = vmatprep.subr.mxu0 0.0
  %586 = vmatpush1.msra.mxu0 %v27
  %587 = vmatprep.subr.mxu0 0.0
  %588 = vmatpush1.msra.mxu0 %v28
  %589 = vmatprep.subr.mxu0 0.0
  %590 = vmatpush1.msra.mxu0 %v29
  %591 = vmatprep.subr.mxu0 0.0
  %592 = vmatpush1.msra.mxu0 %v30
  %593 = vmatprep.subr.mxu0 0.0
  %594 = vmatpush1.msra.mxu0 %v31
  %595 = vmatprep.subr.mxu0 0.0
  %596 = vmatpush1.msra.mxu0 %v32
  %597 = vmatprep.subr.mxu0 0.0
  %598 = vmatpush1.msra.mxu0 %v33
  %599 = vmatprep.subr.mxu0 0.0
  %600 = vmatpush1.msra.mxu0 %v34
  %601 = vmatprep.subr.mxu0 0.0
  %602 = vmatpush1.msra.mxu0 0.0
  %603 = vmatprep.subr.mxu0 0.0
  %604 = vmatpush1.msra.mxu0 0.0
  %605 = vmatprep.subr.mxu0 0.0
  %606 = vmatpush1.msra.mxu0 0.0
  %607 = vmatprep.subr.mxu0 0.0
  %608 = vmatpush1.msra.mxu0 0.0
  %609 = vmatprep.subr.mxu0 0.0
  %610 = vmatpush1.msra.mxu0 0.0
  %611 = vmatprep.subr.mxu0 0.0
  %612 = vmatpush1.msra.mxu0 0.0
  %613 = vmatprep.subr.mxu0 0.0
  %614 = vmatpush1.msra.mxu0 0.0
  %615 = vmatprep.subr.mxu0 0.0
  %616 = vmatpush1.msra.mxu0 0.0
  %617 = vmatprep.subr.mxu0 0.0
  %618 = vmatpush1.msra.mxu0 0.0
  %619 = vmatprep.subr.mxu0 0.0
  %620 = vmatpush1.msra.mxu0 0.0
  %621 = vmatprep.subr.mxu0 0.0
  %622 = vmatpush1.msra.mxu0 0.0
  %623 = vmatprep.subr.mxu0 0.0
  %624 = vmatpush1.msra.mxu0 0.0
  %625 = vmatprep.subr.mxu0 0.0
  %626 = vmatpush1.msra.mxu0 0.0
  %627 = vmatprep.subr.mxu0 0.0
  %628 = vmatpush1.msra.mxu0 0.0
  %629 = vmatprep.subr.mxu0 0.0
  %630 = vmatpush1.msra.mxu0 0.0
  %631 = vmatprep.subr.mxu0 0.0
  %632 = vmatpush1.msra.mxu0 0.0
  %633 = vmatprep.mubr.f32.mxu0 0.0
  %634 = vmatmul.mubr.f32.gmra.mrb[0].mxu0 %v562
  %v635 = vpop.f32.mrb[0].mxu0
  %v636 = vadd.f32 %v82, %v635
  %v637 = vpop.f32.mrb[0].mxu0
  %638 = vdwg.mxu0
  %639 = vmatprep.subr.mxu0 0.0
  %640 = vmatpush1.msra.mxu0 %v36
  %641 = vmatprep.subr.mxu0 0.0
  %642 = vmatpush1.msra.mxu0 %v37
  %643 = vmatprep.subr.mxu0 0.0
  %644 = vmatpush1.msra.mxu0 %v38
  %645 = vmatprep.subr.mxu0 0.0
  %646 = vmatpush1.msra.mxu0 %v39
  %647 = vmatprep.subr.mxu0 0.0
  %648 = vmatpush1.msra.mxu0 %v40
  %649 = vmatprep.subr.mxu0 0.0
  %650 = vmatpush1.msra.mxu0 %v41
  %651 = vmatprep.subr.mxu0 0.0
  %652 = vmatpush1.msra.mxu0 %v42
  %653 = vmatprep.subr.mxu0 0.0
  %654 = vmatpush1.msra.mxu0 %v43
  %655 = vmatprep.subr.mxu0 0.0
  %656 = vmatpush1.msra.mxu0 %v44
  %657 = vmatprep.subr.mxu0 0.0
  %658 = vmatpush1.msra.mxu0 %v45
  %659 = vmatprep.subr.mxu0 0.0
  %660 = vmatpush1.msra.mxu0 %v46
  %661 = vmatprep.subr.mxu0 0.0
  %662 = vmatpush1.msra.mxu0 %v47
  %663 = vmatprep.subr.mxu0 0.0
  %664 = vmatpush1.msra.mxu0 %v48
  %665 = vmatprep.subr.mxu0 0.0
  %666 = vmatpush1.msra.mxu0 %v49
  %667 = vmatprep.subr.mxu0 0.0
  %668 = vmatpush1.msra.mxu0 %v50
  %669 = vmatprep.subr.mxu0 0.0
  %670 = vmatpush1.msra.mxu0 %v51
  %671 = vmatprep.subr.mxu0 0.0
  %672 = vmatpush1.msra.mxu0 0.0
  %673 = vmatprep.subr.mxu0 0.0
  %674 = vmatpush1.msra.mxu0 0.0
  %675 = vmatprep.subr.mxu0 0.0
  %676 = vmatpush1.msra.mxu0 0.0
  %677 = vmatprep.subr.mxu0 0.0
  %678 = vmatpush1.msra.mxu0 0.0
  %679 = vmatprep.subr.mxu0 0.0
  %680 = vmatpush1.msra.mxu0 0.0
  %681 = vmatprep.subr.mxu0 0.0
  %682 = vmatpush1.msra.mxu0 0.0
  %683 = vmatprep.subr.mxu0 0.0
  %684 = vmatpush1.msra.mxu0 0.0
  %685 = vmatprep.subr.mxu0 0.0
  %686 = vmatpush1.msra.mxu0 0.0
  %687 = vmatprep.subr.mxu0 0.0
  %688 = vmatpush1.msra.mxu0 0.0
  %689 = vmatprep.subr.mxu0 0.0
  %690 = vmatpush1.msra.mxu0 0.0
  %691 = vmatprep.subr.mxu0 0.0
  %692 = vmatpush1.msra.mxu0 0.0
  %693 = vmatprep.subr.mxu0 0.0
  %694 = vmatpush1.msra.mxu0 0.0
  %695 = vmatprep.subr.mxu0 0.0
  %696 = vmatpush1.msra.mxu0 0.0
  %697 = vmatprep.subr.mxu0 0.0
  %698 = vmatpush1.msra.mxu0 0.0
  %699 = vmatprep.subr.mxu0 0.0
  %700 = vmatpush1.msra.mxu0 0.0
  %701 = vmatprep.subr.mxu0 0.0
  %702 = vmatpush1.msra.mxu0 0.0
  %703 = vmatprep.mubr.f32.mxu0 0.0
  %704 = vmatmul.mubr.f32.gmra.mrb[0].mxu0 %v562
  %v705 = vpop.f32.mrb[0].mxu0
  %v706 = vadd.f32 %v158, %v705
  %v707 = vpop.f32.mrb[0].mxu0
  %708 = vdwg.mxu0
  %709 = vmatprep.subr.mxu0 0.0
  %710 = vmatpush1.msra.mxu0 %v53
  %711 = vmatprep.subr.mxu0 0.0
  %712 = vmatpush1.msra.mxu0 %v54
  %713 = vmatprep.subr.mxu0 0.0
  %714 = vmatpush1.msra.mxu0 %v55
  %715 = vmatprep.subr.mxu0 0.0
  %716 = vmatpush1.msra.mxu0 %v56
  %717 = vmatprep.subr.mxu0 0.0
  %718 = vmatpush1.msra.mxu0 %v57
  %719 = vmatprep.subr.mxu0 0.0
  %720 = vmatpush1.msra.mxu0 %v58
  %721 = vmatprep.subr.mxu0 0.0
  %722 = vmatpush1.msra.mxu0 %v59
  %723 = vmatprep.subr.mxu0 0.0
  %724 = vmatpush1.msra.mxu0 %v60
  %725 = vmatprep.subr.mxu0 0.0
  %726 = vmatpush1.msra.mxu0 %v61
  %727 = vmatprep.subr.mxu0 0.0
  %728 = vmatpush1.msra.mxu0 %v62
  %729 = vmatprep.subr.mxu0 0.0
  %730 = vmatpush1.msra.mxu0 %v63
  %731 = vmatprep.subr.mxu0 0.0
  %732 = vmatpush1.msra.mxu0 %v64
  %733 = vmatprep.subr.mxu0 0.0
  %734 = vmatpush1.msra.mxu0 %v65
  %735 = vmatprep.subr.mxu0 0.0
  %736 = vmatpush1.msra.mxu0 %v66
  %737 = vmatprep.subr.mxu0 0.0
  %738 = vmatpush1.msra.mxu0 %v67
  %739 = vmatprep.subr.mxu0 0.0
  %740 = vmatpush1.msra.mxu0 %v68
  %741 = vmatprep.subr.mxu0 0.0
  %742 = vmatpush1.msra.mxu0 0.0
  %743 = vmatprep.subr.mxu0 0.0
  %744 = vmatpush1.msra.mxu0 0.0
  %745 = vmatprep.subr.mxu0 0.0
  %746 = vmatpush1.msra.mxu0 0.0
  %747 = vmatprep.subr.mxu0 0.0
  %748 = vmatpush1.msra.mxu0 0.0
  %749 = vmatprep.subr.mxu0 0.0
  %750 = vmatpush1.msra.mxu0 0.0
  %751 = vmatprep.subr.mxu0 0.0
  %752 = vmatpush1.msra.mxu0 0.0
  %753 = vmatprep.subr.mxu0 0.0
  %754 = vmatpush1.msra.mxu0 0.0
  %755 = vmatprep.subr.mxu0 0.0
  %756 = vmatpush1.msra.mxu0 0.0
  %757 = vmatprep.subr.mxu0 0.0
  %758 = vmatpush1.msra.mxu0 0.0
  %759 = vmatprep.subr.mxu0 0.0
  %760 = vmatpush1.msra.mxu0 0.0
  %761 = vmatprep.subr.mxu0 0.0
  %762 = vmatpush1.msra.mxu0 0.0
  %763 = vmatprep.subr.mxu0 0.0
  %764 = vmatpush1.msra.mxu0 0.0
  %765 = vmatprep.subr.mxu0 0.0
  %766 = vmatpush1.msra.mxu0 0.0
  %767 = vmatprep.subr.mxu0 0.0
  %768 = vmatpush1.msra.mxu0 0.0
  %769 = vmatprep.subr.mxu0 0.0
  %770 = vmatpush1.msra.mxu0 0.0
  %771 = vmatprep.subr.mxu0 0.0
  %772 = vmatpush1.msra.mxu0 0.0
  %773 = vmatprep.mubr.f32.mxu0 0.0
  %774 = vmatmul.mubr.f32.gmra.mrb[0].mxu0 %v562
  %v775 = vpop.f32.mrb[0].mxu0
  %v776 = vadd.f32 %v234, %v775
  %v777 = vpop.f32.mrb[0].mxu0
  %778 = vdwg.mxu0
  %v779 = vadd.f32 %v566, %v636
  %v780 = vxor.u32 %v779, 2147483648
  %v781 = vmul.f32 %v780, 1.442695
  %v782 = vpow.pop %v781
  %v783 = vadd.f32 %v782, 1.0
  %v784 = vrcp.pop %v783
  %v785 = vmul.f32 1.0, %v784
  %v786 = vadd.f32 %v567, %v706
  %v787 = vxor.u32 %v786, 2147483648
  %v788 = vmul.f32 %v787, 1.442695
  %v789 = vpow.pop %v788
  %v790 = vadd.f32 %v789, 1.0
  %v791 = vrcp.pop %v790
  %v792 = vmul.f32 1.0, %v791
  %v793 = vmul.f32 %v785, %v776
  %v794 = vadd.f32 %v568, %v793
  %v795 = vtanh.pop %v794
  %v796 = vsub.f32 1.0, %v792
  %v797 = vmul.f32 %v796, %v795
  %v798 = vmul.f32 %v792, %v562
  %v799 = vadd.f32 %v797, %v798
  %s800 = scalar_lea.vmem %s3, 16
  %801 = vst [vmem:[%s800] sm:$0xff] %v799
  %s802 = scalar_lea.vmem %s0, 72
  %v803 = vld [vmem:[%s802] sm:$0xff]
  %v804 = vld [vmem:[%s802 + $0x8] sm:$0xff]
  %v805 = vld [vmem:[%s802 + $0x10] sm:$0xff]
  %806 = vmatprep.subr.mxu0 0.0
  %807 = vmatpush1.msra.mxu0 %v19
  %808 = vmatprep.subr.mxu0 0.0
  %809 = vmatpush1.msra.mxu0 %v20
  %810 = vmatprep.subr.mxu0 0.0
  %811 = vmatpush1.msra.mxu0 %v21
  %812 = vmatprep.subr.mxu0 0.0
  %813 = vmatpush1.msra.mxu0 %v22
  %814 = vmatprep.subr.mxu0 0.0
  %815 = vmatpush1.msra.mxu0 %v23
  %816 = vmatprep.subr.mxu0 0.0
  %817 = vmatpush1.msra.mxu0 %v24
  %818 = vmatprep.subr.mxu0 0.0
  %819 = vmatpush1.msra.mxu0 %v25
  %820 = vmatprep.subr.mxu0 0.0
  %821 = vmatpush1.msra.mxu0 %v26
  %822 = vmatprep.subr.mxu0 0.0
  %823 = vmatpush1.msra.mxu0 %v27
  %824 = vmatprep.subr.mxu0 0.0
  %825 = vmatpush1.msra.mxu0 %v28
  %826 = vmatprep.subr.mxu0 0.0
  %827 = vmatpush1.msra.mxu0 %v29
  %828 = vmatprep.subr.mxu0 0.0
  %829 = vmatpush1.msra.mxu0 %v30
  %830 = vmatprep.subr.mxu0 0.0
  %831 = vmatpush1.msra.mxu0 %v31
  %832 = vmatprep.subr.mxu0 0.0
  %833 = vmatpush1.msra.mxu0 %v32
  %834 = vmatprep.subr.mxu0 0.0
  %835 = vmatpush1.msra.mxu0 %v33
  %836 = vmatprep.subr.mxu0 0.0
  %837 = vmatpush1.msra.mxu0 %v34
  %838 = vmatprep.subr.mxu0 0.0
  %839 = vmatpush1.msra.mxu0 0.0
  %840 = vmatprep.subr.mxu0 0.0
  %841 = vmatpush1.msra.mxu0 0.0
  %842 = vmatprep.subr.mxu0 0.0
  %843 = vmatpush1.msra.mxu0 0.0
  %844 = vmatprep.subr.mxu0 0.0
  %845 = vmatpush1.msra.mxu0 0.0
  %846 = vmatprep.subr.mxu0 0.0
  %847 = vmatpush1.msra.mxu0 0.0
  %848 = vmatprep.subr.mxu0 0.0
  %849 = vmatpush1.msra.mxu0 0.0
  %850 = vmatprep.subr.mxu0 0.0
  %851 = vmatpush1.msra.mxu0 0.0
  %852 = vmatprep.subr.mxu0 0.0
  %853 = vmatpush1.msra.mxu0 0.0
  %854 = vmatprep.subr.mxu0 0.0
  %855 = vmatpush1.msra.mxu0 0.0
  %856 = vmatprep.subr.mxu0 0.0
  %857 = vmatpush1.msra.mxu0 0.0
  %858 = vmatprep.subr.mxu0 0.0
  %859 = vmatpush1.msra.mxu0 0.0
  %860 = vmatprep.subr.mxu0 0.0
  %861 = vmatpush1.msra.mxu0 0.0
  %862 = vmatprep.subr.mxu0 0.0
  %863 = vmatpush1.msra.mxu0 0.0
  %864 = vmatprep.subr.mxu0 0.0
  %865 = vmatpush1.msra.mxu0 0.0
  %866 = vmatprep.subr.mxu0 0.0
  %867 = vmatpush1.msra.mxu0 0.0
  %868 = vmatprep.subr.mxu0 0.0
  %869 = vmatpush1.msra.mxu0 0.0
  %870 = vmatprep.mubr.f32.mxu0 0.0
  %871 = vmatmul.mubr.f32.gmra.mrb[0].mxu0 %v799
  %v872 = vpop.f32.mrb[0].mxu0
  %v873 = vadd.f32 %v82, %v872
  %v874 = vpop.f32.mrb[0].mxu0
  %875 = vdwg.mxu0
  %876 = vmatprep.subr.mxu0 0.0
  %877 = vmatpush1.msra.mxu0 %v36
  %878 = vmatprep.subr.mxu0 0.0
  %879 = vmatpush1.msra.mxu0 %v37
  %880 = vmatprep.subr.mxu0 0.0
  %881 = vmatpush1.msra.mxu0 %v38
  %882 = vmatprep.subr.mxu0 0.0
  %883 = vmatpush1.msra.mxu0 %v39
  %884 = vmatprep.subr.mxu0 0.0
  %885 = vmatpush1.msra.mxu0 %v40
  %886 = vmatprep.subr.mxu0 0.0
  %887 = vmatpush1.msra.mxu0 %v41
  %888 = vmatprep.subr.mxu0 0.0
  %889 = vmatpush1.msra.mxu0 %v42
  %890 = vmatprep.subr.mxu0 0.0
  %891 = vmatpush1.msra.mxu0 %v43
  %892 = vmatprep.subr.mxu0 0.0
  %893 = vmatpush1.msra.mxu0 %v44
  %894 = vmatprep.subr.mxu0 0.0
  %895 = vmatpush1.msra.mxu0 %v45
  %896 = vmatprep.subr.mxu0 0.0
  %897 = vmatpush1.msra.mxu0 %v46
  %898 = vmatprep.subr.mxu0 0.0
  %899 = vmatpush1.msra.mxu0 %v47
  %900 = vmatprep.subr.mxu0 0.0
  %901 = vmatpush1.msra.mxu0 %v48
  %902 = vmatprep.subr.mxu0 0.0
  %903 = vmatpush1.msra.mxu0 %v49
  %904 = vmatprep.subr.mxu0 0.0
  %905 = vmatpush1.msra.mxu0 %v50
  %906 = vmatprep.subr.mxu0 0.0
  %907 = vmatpush1.msra.mxu0 %v51
  %908 = vmatprep.subr.mxu0 0.0
  %909 = vmatpush1.msra.mxu0 0.0
  %910 = vmatprep.subr.mxu0 0.0
  %911 = vmatpush1.msra.mxu0 0.0
  %912 = vmatprep.subr.mxu0 0.0
  %913 = vmatpush1.msra.mxu0 0.0
  %914 = vmatprep.subr.mxu0 0.0
  %915 = vmatpush1.msra.mxu0 0.0
  %916 = vmatprep.subr.mxu0 0.0
  %917 = vmatpush1.msra.mxu0 0.0
  %918 = vmatprep.subr.mxu0 0.0
  %919 = vmatpush1.msra.mxu0 0.0
  %920 = vmatprep.subr.mxu0 0.0
  %921 = vmatpush1.msra.mxu0 0.0
  %922 = vmatprep.subr.mxu0 0.0
  %923 = vmatpush1.msra.mxu0 0.0
  %924 = vmatprep.subr.mxu0 0.0
  %925 = vmatpush1.msra.mxu0 0.0
  %926 = vmatprep.subr.mxu0 0.0
  %927 = vmatpush1.msra.mxu0 0.0
  %928 = vmatprep.subr.mxu0 0.0
  %929 = vmatpush1.msra.mxu0 0.0
  %930 = vmatprep.subr.mxu0 0.0
  %931 = vmatpush1.msra.mxu0 0.0
  %932 = vmatprep.subr.mxu0 0.0
  %933 = vmatpush1.msra.mxu0 0.0
  %934 = vmatprep.subr.mxu0 0.0
  %935 = vmatpush1.msra.mxu0 0.0
  %936 = vmatprep.subr.mxu0 0.0
  %937 = vmatpush1.msra.mxu0 0.0
  %938 = vmatprep.subr.mxu0 0.0
  %939 = vmatpush1.msra.mxu0 0.0
  %940 = vmatprep.mubr.f32.mxu0 0.0
  %941 = vmatmul.mubr.f32.gmra.mrb[0].mxu0 %v799
  %v942 = vpop.f32.mrb[0].mxu0
  %v943 = vadd.f32 %v158, %v942
  %v944 = vpop.f32.mrb[0].mxu0
  %945 = vdwg.mxu0
  %946 = vmatprep.subr.mxu0 0.0
  %947 = vmatpush1.msra.mxu0 %v53
  %948 = vmatprep.subr.mxu0 0.0
  %949 = vmatpush1.msra.mxu0 %v54
  %950 = vmatprep.subr.mxu0 0.0
  %951 = vmatpush1.msra.mxu0 %v55
  %952 = vmatprep.subr.mxu0 0.0
  %953 = vmatpush1.msra.mxu0 %v56
  %954 = vmatprep.subr.mxu0 0.0
  %955 = vmatpush1.msra.mxu0 %v57
  %956 = vmatprep.subr.mxu0 0.0
  %957 = vmatpush1.msra.mxu0 %v58
  %958 = vmatprep.subr.mxu0 0.0
  %959 = vmatpush1.msra.mxu0 %v59
  %960 = vmatprep.subr.mxu0 0.0
  %961 = vmatpush1.msra.mxu0 %v60
  %962 = vmatprep.subr.mxu0 0.0
  %963 = vmatpush1.msra.mxu0 %v61
  %964 = vmatprep.subr.mxu0 0.0
  %965 = vmatpush1.msra.mxu0 %v62
  %966 = vmatprep.subr.mxu0 0.0
  %967 = vmatpush1.msra.mxu0 %v63
  %968 = vmatprep.subr.mxu0 0.0
  %969 = vmatpush1.msra.mxu0 %v64
  %970 = vmatprep.subr.mxu0 0.0
  %971 = vmatpush1.msra.mxu0 %v65
  %972 = vmatprep.subr.mxu0 0.0
  %973 = vmatpush1.msra.mxu0 %v66
  %974 = vmatprep.subr.mxu0 0.0
  %975 = vmatpush1.msra.mxu0 %v67
  %976 = vmatprep.subr.mxu0 0.0
  %977 = vmatpush1.msra.mxu0 %v68
  %978 = vmatprep.subr.mxu0 0.0
  %979 = vmatpush1.msra.mxu0 0.0
  %980 = vmatprep.subr.mxu0 0.0
  %981 = vmatpush1.msra.mxu0 0.0
  %982 = vmatprep.subr.mxu0 0.0
  %983 = vmatpush1.msra.mxu0 0.0
  %984 = vmatprep.subr.mxu0 0.0
  %985 = vmatpush1.msra.mxu0 0.0
  %986 = vmatprep.subr.mxu0 0.0
  %987 = vmatpush1.msra.mxu0 0.0
  %988 = vmatprep.subr.mxu0 0.0
  %989 = vmatpush1.msra.mxu0 0.0
  %990 = vmatprep.subr.mxu0 0.0
  %991 = vmatpush1.msra.mxu0 0.0
  %992 = vmatprep.subr.mxu0 0.0
  %993 = vmatpush1.msra.mxu0 0.0
  %994 = vmatprep.subr.mxu0 0.0
  %995 = vmatpush1.msra.mxu0 0.0
  %996 = vmatprep.subr.mxu0 0.0
  %997 = vmatpush1.msra.mxu0 0.0
  %998 = vmatprep.subr.mxu0 0.0
  %999 = vmatpush1.msra.mxu0 0.0
  %1000 = vmatprep.subr.mxu0 0.0
  %1001 = vmatpush1.msra.mxu0 0.0
  %1002 = vmatprep.subr.mxu0 0.0
  %1003 = vmatpush1.msra.mxu0 0.0
  %1004 = vmatprep.subr.mxu0 0.0
  %1005 = vmatpush1.msra.mxu0 0.0
  %1006 = vmatprep.subr.mxu0 0.0
  %1007 = vmatpush1.msra.mxu0 0.0
  %1008 = vmatprep.subr.mxu0 0.0
  %1009 = vmatpush1.msra.mxu0 0.0
  %1010 = vmatprep.mubr.f32.mxu0 0.0
  %1011 = vmatmul.mubr.f32.gmra.mrb[0].mxu0 %v799
  %v1012 = vpop.f32.mrb[0].mxu0
  %v1013 = vadd.f32 %v234, %v1012
  %v1014 = vpop.f32.mrb[0].mxu0
  %1015 = vdwg.mxu0
  %v1016 = vadd.f32 %v803, %v873
  %v1017 = vxor.u32 %v1016, 2147483648
  %v1018 = vmul.f32 %v1017, 1.442695
  %v1019 = vpow.pop %v1018
  %v1020 = vadd.f32 %v1019, 1.0
  %v1021 = vrcp.pop %v1020
  %v1022 = vmul.f32 1.0, %v1021
  %v1023 = vadd.f32 %v804, %v943
  %v1024 = vxor.u32 %v1023, 2147483648
  %v1025 = vmul.f32 %v1024, 1.442695
  %v1026 = vpow.pop %v1025
  %v1027 = vadd.f32 %v1026, 1.0
  %v1028 = vrcp.pop %v1027
  %v1029 = vmul.f32 1.0, %v1028
  %v1030 = vmul.f32 %v1022, %v1013
  %v1031 = vadd.f32 %v805, %v1030
  %v1032 = vtanh.pop %v1031
  %v1033 = vsub.f32 1.0, %v1029
  %v1034 = vmul.f32 %v1033, %v1032
  %v1035 = vmul.f32 %v1029, %v799
  %v1036 = vadd.f32 %v1034, %v1035
  %s1037 = scalar_lea.vmem %s3, 24
  %1038 = vst [vmem:[%s1037] sm:$0xff] %v1036
  %s1039 = scalar_lea.vmem %s0, 96
  %v1040 = vld [vmem:[%s1039] sm:$0xff]
  %v1041 = vld [vmem:[%s1039 + $0x8] sm:$0xff]
  %v1042 = vld [vmem:[%s1039 + $0x10] sm:$0xff]
  %1043 = vmatprep.subr.mxu0 0.0
  %1044 = vmatpush1.msra.mxu0 %v19
  %1045 = vmatprep.subr.mxu0 0.0
  %1046 = vmatpush1.msra.mxu0 %v20
  %1047 = vmatprep.subr.mxu0 0.0
  %1048 = vmatpush1.msra.mxu0 %v21
  %1049 = vmatprep.subr.mxu0 0.0
  %1050 = vmatpush1.msra.mxu0 %v22
  %1051 = vmatprep.subr.mxu0 0.0
  %1052 = vmatpush1.msra.mxu0 %v23
  %1053 = vmatprep.subr.mxu0 0.0
  %1054 = vmatpush1.msra.mxu0 %v24
  %1055 = vmatprep.subr.mxu0 0.0
  %1056 = vmatpush1.msra.mxu0 %v25
  %1057 = vmatprep.subr.mxu0 0.0
  %1058 = vmatpush1.msra.mxu0 %v26
  %1059 = vmatprep.subr.mxu0 0.0
  %1060 = vmatpush1.msra.mxu0 %v27
  %1061 = vmatprep.subr.mxu0 0.0
  %1062 = vmatpush1.msra.mxu0 %v28
  %1063 = vmatprep.subr.mxu0 0.0
  %1064 = vmatpush1.msra.mxu0 %v29
  %1065 = vmatprep.subr.mxu0 0.0
  %1066 = vmatpush1.msra.mxu0 %v30
  %1067 = vmatprep.subr.mxu0 0.0
  %1068 = vmatpush1.msra.mxu0 %v31
  %1069 = vmatprep.subr.mxu0 0.0
  %1070 = vmatpush1.msra.mxu0 %v32
  %1071 = vmatprep.subr.mxu0 0.0
  %1072 = vmatpush1.msra.mxu0 %v33
  %1073 = vmatprep.subr.mxu0 0.0
  %1074 = vmatpush1.msra.mxu0 %v34
  %1075 = vmatprep.subr.mxu0 0.0
  %1076 = vmatpush1.msra.mxu0 0.0
  %1077 = vmatprep.subr.mxu0 0.0
  %1078 = vmatpush1.msra.mxu0 0.0
  %1079 = vmatprep.subr.mxu0 0.0
  %1080 = vmatpush1.msra.mxu0 0.0
  %1081 = vmatprep.subr.mxu0 0.0
  %1082 = vmatpush1.msra.mxu0 0.0
  %1083 = vmatprep.subr.mxu0 0.0
  %1084 = vmatpush1.msra.mxu0 0.0
  %1085 = vmatprep.subr.mxu0 0.0
  %1086 = vmatpush1.msra.mxu0 0.0
  %1087 = vmatprep.subr.mxu0 0.0
  %1088 = vmatpush1.msra.mxu0 0.0
  %1089 = vmatprep.subr.mxu0 0.0
  %1090 = vmatpush1.msra.mxu0 0.0
  %1091 = vmatprep.subr.mxu0 0.0
  %1092 = vmatpush1.msra.mxu0 0.0
  %1093 = vmatprep.subr.mxu0 0.0
  %1094 = vmatpush1.msra.mxu0 0.0
  %1095 = vmatprep.subr.mxu0 0.0
  %1096 = vmatpush1.msra.mxu0 0.0
  %1097 = vmatprep.subr.mxu0 0.0
  %1098 = vmatpush1.msra.mxu0 0.0
  %1099 = vmatprep.subr.mxu0 0.0
  %1100 = vmatpush1.msra.mxu0 0.0
  %1101 = vmatprep.subr.mxu0 0.0
  %1102 = vmatpush1.msra.mxu0 0.0
  %1103 = vmatprep.subr.mxu0 0.0
  %1104 = vmatpush1.msra.mxu0 0.0
  %1105 = vmatprep.subr.mxu0 0.0
  %1106 = vmatpush1.msra.mxu0 0.0
  %1107 = vmatprep.mubr.f32.mxu0 0.0
  %1108 = vmatmul.mubr.f32.gmra.mrb[0].mxu0 %v1036
  %v1109 = vpop.f32.mrb[0].mxu0
  %v1110 = vadd.f32 %v82, %v1109
  %v1111 = vpop.f32.mrb[0].mxu0
  %1112 = vdwg.mxu0
  %1113 = vmatprep.subr.mxu0 0.0
  %1114 = vmatpush1.msra.mxu0 %v36
  %1115 = vmatprep.subr.mxu0 0.0
  %1116 = vmatpush1.msra.mxu0 %v37
  %1117 = vmatprep.subr.mxu0 0.0
  %1118 = vmatpush1.msra.mxu0 %v38
  %1119 = vmatprep.subr.mxu0 0.0
  %1120 = vmatpush1.msra.mxu0 %v39
  %1121 = vmatprep.subr.mxu0 0.0
  %1122 = vmatpush1.msra.mxu0 %v40
  %1123 = vmatprep.subr.mxu0 0.0
  %1124 = vmatpush1.msra.mxu0 %v41
  %1125 = vmatprep.subr.mxu0 0.0
  %1126 = vmatpush1.msra.mxu0 %v42
  %1127 = vmatprep.subr.mxu0 0.0
  %1128 = vmatpush1.msra.mxu0 %v43
  %1129 = vmatprep.subr.mxu0 0.0
  %1130 = vmatpush1.msra.mxu0 %v44
  %1131 = vmatprep.subr.mxu0 0.0
  %1132 = vmatpush1.msra.mxu0 %v45
  %1133 = vmatprep.subr.mxu0 0.0
  %1134 = vmatpush1.msra.mxu0 %v46
  %1135 = vmatprep.subr.mxu0 0.0
  %1136 = vmatpush1.msra.mxu0 %v47
  %1137 = vmatprep.subr.mxu0 0.0
  %1138 = vmatpush1.msra.mxu0 %v48
  %1139 = vmatprep.subr.mxu0 0.0
  %1140 = vmatpush1.msra.mxu0 %v49
  %1141 = vmatprep.subr.mxu0 0.0
  %1142 = vmatpush1.msra.mxu0 %v50
  %1143 = vmatprep.subr.mxu0 0.0
  %1144 = vmatpush1.msra.mxu0 %v51
  %1145 = vmatprep.subr.mxu0 0.0
  %1146 = vmatpush1.msra.mxu0 0.0
  %1147 = vmatprep.subr.mxu0 0.0
  %1148 = vmatpush1.msra.mxu0 0.0
  %1149 = vmatprep.subr.mxu0 0.0
  %1150 = vmatpush1.msra.mxu0 0.0
  %1151 = vmatprep.subr.mxu0 0.0
  %1152 = vmatpush1.msra.mxu0 0.0
  %1153 = vmatprep.subr.mxu0 0.0
  %1154 = vmatpush1.msra.mxu0 0.0
  %1155 = vmatprep.subr.mxu0 0.0
  %1156 = vmatpush1.msra.mxu0 0.0
  %1157 = vmatprep.subr.mxu0 0.0
  %1158 = vmatpush1.msra.mxu0 0.0
  %1159 = vmatprep.subr.mxu0 0.0
  %1160 = vmatpush1.msra.mxu0 0.0
  %1161 = vmatprep.subr.mxu0 0.0
  %1162 = vmatpush1.msra.mxu0 0.0
  %1163 = vmatprep.subr.mxu0 0.0
  %1164 = vmatpush1.msra.mxu0 0.0
  %1165 = vmatprep.subr.mxu0 0.0
  %1166 = vmatpush1.msra.mxu0 0.0
  %1167 = vmatprep.subr.mxu0 0.0
  %1168 = vmatpush1.msra.mxu0 0.0
  %1169 = vmatprep.subr.mxu0 0.0
  %1170 = vmatpush1.msra.mxu0 0.0
  %1171 = vmatprep.subr.mxu0 0.0
  %1172 = vmatpush1.msra.mxu0 0.0
  %1173 = vmatprep.subr.mxu0 0.0
  %1174 = vmatpush1.msra.mxu0 0.0
  %1175 = vmatprep.subr.mxu0 0.0
  %1176 = vmatpush1.msra.mxu0 0.0
  %1177 = vmatprep.mubr.f32.mxu0 0.0
  %1178 = vmatmul.mubr.f32.gmra.mrb[0].mxu0 %v1036
  %v1179 = vpop.f32.mrb[0].mxu0
  %v1180 = vadd.f32 %v158, %v1179
  %v1181 = vpop.f32.mrb[0].mxu0
  %1182 = vdwg.mxu0
  %1183 = vmatprep.subr.mxu0 0.0
  %1184 = vmatpush1.msra.mxu0 %v53
  %1185 = vmatprep.subr.mxu0 0.0
  %1186 = vmatpush1.msra.mxu0 %v54
  %1187 = vmatprep.subr.mxu0 0.0
  %1188 = vmatpush1.msra.mxu0 %v55
  %1189 = vmatprep.subr.mxu0 0.0
  %1190 = vmatpush1.msra.mxu0 %v56
  %1191 = vmatprep.subr.mxu0 0.0
  %1192 = vmatpush1.msra.mxu0 %v57
  %1193 = vmatprep.subr.mxu0 0.0
  %1194 = vmatpush1.msra.mxu0 %v58
  %1195 = vmatprep.subr.mxu0 0.0
  %1196 = vmatpush1.msra.mxu0 %v59
  %1197 = vmatprep.subr.mxu0 0.0
  %1198 = vmatpush1.msra.mxu0 %v60
  %1199 = vmatprep.subr.mxu0 0.0
  %1200 = vmatpush1.msra.mxu0 %v61
  %1201 = vmatprep.subr.mxu0 0.0
  %1202 = vmatpush1.msra.mxu0 %v62
  %1203 = vmatprep.subr.mxu0 0.0
  %1204 = vmatpush1.msra.mxu0 %v63
  %1205 = vmatprep.subr.mxu0 0.0
  %1206 = vmatpush1.msra.mxu0 %v64
  %1207 = vmatprep.subr.mxu0 0.0
  %1208 = vmatpush1.msra.mxu0 %v65
  %1209 = vmatprep.subr.mxu0 0.0
  %1210 = vmatpush1.msra.mxu0 %v66
  %1211 = vmatprep.subr.mxu0 0.0
  %1212 = vmatpush1.msra.mxu0 %v67
  %1213 = vmatprep.subr.mxu0 0.0
  %1214 = vmatpush1.msra.mxu0 %v68
  %1215 = vmatprep.subr.mxu0 0.0
  %1216 = vmatpush1.msra.mxu0 0.0
  %1217 = vmatprep.subr.mxu0 0.0
  %1218 = vmatpush1.msra.mxu0 0.0
  %1219 = vmatprep.subr.mxu0 0.0
  %1220 = vmatpush1.msra.mxu0 0.0
  %1221 = vmatprep.subr.mxu0 0.0
  %1222 = vmatpush1.msra.mxu0 0.0
  %1223 = vmatprep.subr.mxu0 0.0
  %1224 = vmatpush1.msra.mxu0 0.0
  %1225 = vmatprep.subr.mxu0 0.0
  %1226 = vmatpush1.msra.mxu0 0.0
  %1227 = vmatprep.subr.mxu0 0.0
  %1228 = vmatpush1.msra.mxu0 0.0
  %1229 = vmatprep.subr.mxu0 0.0
  %1230 = vmatpush1.msra.mxu0 0.0
  %1231 = vmatprep.subr.mxu0 0.0
  %1232 = vmatpush1.msra.mxu0 0.0
  %1233 = vmatprep.subr.mxu0 0.0
  %1234 = vmatpush1.msra.mxu0 0.0
  %1235 = vmatprep.subr.mxu0 0.0
  %1236 = vmatpush1.msra.mxu0 0.0
  %1237 = vmatprep.subr.mxu0 0.0
  %1238 = vmatpush1.msra.mxu0 0.0
  %1239 = vmatprep.subr.mxu0 0.0
  %1240 = vmatpush1.msra.mxu0 0.0
  %1241 = vmatprep.subr.mxu0 0.0
  %1242 = vmatpush1.msra.mxu0 0.0
  %1243 = vmatprep.subr.mxu0 0.0
  %1244 = vmatpush1.msra.mxu0 0.0
  %1245 = vmatprep.subr.mxu0 0.0
  %1246 = vmatpush1.msra.mxu0 0.0
  %1247 = vmatprep.mubr.f32.mxu0 0.0
  %1248 = vmatmul.mubr.f32.gmra.mrb[0].mxu0 %v1036
  %v1249 = vpop.f32.mrb[0].mxu0
  %v1250 = vadd.f32 %v234, %v1249
  %v1251 = vpop.f32.mrb[0].mxu0
  %1252 = vdwg.mxu0
  %v1253 = vadd.f32 %v1040, %v1110
  %v1254 = vxor.u32 %v1253, 2147483648
  %v1255 = vmul.f32 %v1254, 1.442695
  %v1256 = vpow.pop %v1255
  %v1257 = vadd.f32 %v1256, 1.0
  %v1258 = vrcp.pop %v1257
  %v1259 = vmul.f32 1.0, %v1258
  %v1260 = vadd.f32 %v1041, %v1180
  %v1261 = vxor.u32 %v1260, 2147483648
  %v1262 = vmul.f32 %v1261, 1.442695
  %v1263 = vpow.pop %v1262
  %v1264 = vadd.f32 %v1263, 1.0
  %v1265 = vrcp.pop %v1264
  %v1266 = vmul.f32 1.0, %v1265
  %v1267 = vmul.f32 %v1259, %v1250
  %v1268 = vadd.f32 %v1042, %v1267
  %v1269 = vtanh.pop %v1268
  %v1270 = vsub.f32 1.0, %v1266
  %v1271 = vmul.f32 %v1270, %v1269
  %v1272 = vmul.f32 %v1266, %v1036
  %v1273 = vadd.f32 %v1271, %v1272
  %s1274 = scalar_lea.vmem %s3, 32
  %1275 = vst [vmem:[%s1274] sm:$0xff] %v1273
  %s1276 = scalar_lea.vmem %s0, 120
  %v1277 = vld [vmem:[%s1276] sm:$0xff]
  %v1278 = vld [vmem:[%s1276 + $0x8] sm:$0xff]
  %v1279 = vld [vmem:[%s1276 + $0x10] sm:$0xff]
  %1280 = vmatprep.subr.mxu0 0.0
  %1281 = vmatpush1.msra.mxu0 %v19
  %1282 = vmatprep.subr.mxu0 0.0
  %1283 = vmatpush1.msra.mxu0 %v20
  %1284 = vmatprep.subr.mxu0 0.0
  %1285 = vmatpush1.msra.mxu0 %v21
  %1286 = vmatprep.subr.mxu0 0.0
  %1287 = vmatpush1.msra.mxu0 %v22
  %1288 = vmatprep.subr.mxu0 0.0
  %1289 = vmatpush1.msra.mxu0 %v23
  %1290 = vmatprep.subr.mxu0 0.0
  %1291 = vmatpush1.msra.mxu0 %v24
  %1292 = vmatprep.subr.mxu0 0.0
  %1293 = vmatpush1.msra.mxu0 %v25
  %1294 = vmatprep.subr.mxu0 0.0
  %1295 = vmatpush1.msra.mxu0 %v26
  %1296 = vmatprep.subr.mxu0 0.0
  %1297 = vmatpush1.msra.mxu0 %v27
  %1298 = vmatprep.subr.mxu0 0.0
  %1299 = vmatpush1.msra.mxu0 %v28
  %1300 = vmatprep.subr.mxu0 0.0
  %1301 = vmatpush1.msra.mxu0 %v29
  %1302 = vmatprep.subr.mxu0 0.0
  %1303 = vmatpush1.msra.mxu0 %v30
  %1304 = vmatprep.subr.mxu0 0.0
  %1305 = vmatpush1.msra.mxu0 %v31
  %1306 = vmatprep.subr.mxu0 0.0
  %1307 = vmatpush1.msra.mxu0 %v32
  %1308 = vmatprep.subr.mxu0 0.0
  %1309 = vmatpush1.msra.mxu0 %v33
  %1310 = vmatprep.subr.mxu0 0.0
  %1311 = vmatpush1.msra.mxu0 %v34
  %1312 = vmatprep.subr.mxu0 0.0
  %1313 = vmatpush1.msra.mxu0 0.0
  %1314 = vmatprep.subr.mxu0 0.0
  %1315 = vmatpush1.msra.mxu0 0.0
  %1316 = vmatprep.subr.mxu0 0.0
  %1317 = vmatpush1.msra.mxu0 0.0
  %1318 = vmatprep.subr.mxu0 0.0
  %1319 = vmatpush1.msra.mxu0 0.0
  %1320 = vmatprep.subr.mxu0 0.0
  %1321 = vmatpush1.msra.mxu0 0.0
  %1322 = vmatprep.subr.mxu0 0.0
  %1323 = vmatpush1.msra.mxu0 0.0
  %1324 = vmatprep.subr.mxu0 0.0
  %1325 = vmatpush1.msra.mxu0 0.0
  %1326 = vmatprep.subr.mxu0 0.0
  %1327 = vmatpush1.msra.mxu0 0.0
  %1328 = vmatprep.subr.mxu0 0.0
  %1329 = vmatpush1.msra.mxu0 0.0
  %1330 = vmatprep.subr.mxu0 0.0
  %1331 = vmatpush1.msra.mxu0 0.0
  %1332 = vmatprep.subr.mxu0 0.0
  %1333 = vmatpush1.msra.mxu0 0.0
  %1334 = vmatprep.subr.mxu0 0.0
  %1335 = vmatpush1.msra.mxu0 0.0
  %1336 = vmatprep.subr.mxu0 0.0
  %1337 = vmatpush1.msra.mxu0 0.0
  %1338 = vmatprep.subr.mxu0 0.0
  %1339 = vmatpush1.msra.mxu0 0.0
  %1340 = vmatprep.subr.mxu0 0.0
  %1341 = vmatpush1.msra.mxu0 0.0
  %1342 = vmatprep.subr.mxu0 0.0
  %1343 = vmatpush1.msra.mxu0 0.0
  %1344 = vmatprep.mubr.f32.mxu0 0.0
  %1345 = vmatmul.mubr.f32.gmra.mrb[0].mxu0 %v1273
  %v1346 = vpop.f32.mrb[0].mxu0
  %v1347 = vadd.f32 %v82, %v1346
  %v1348 = vpop.f32.mrb[0].mxu0
  %1349 = vdwg.mxu0
  %1350 = vmatprep.subr.mxu0 0.0
  %1351 = vmatpush1.msra.mxu0 %v36
  %1352 = vmatprep.subr.mxu0 0.0
  %1353 = vmatpush1.msra.mxu0 %v37
  %1354 = vmatprep.subr.mxu0 0.0
  %1355 = vmatpush1.msra.mxu0 %v38
  %1356 = vmatprep.subr.mxu0 0.0
  %1357 = vmatpush1.msra.mxu0 %v39
  %1358 = vmatprep.subr.mxu0 0.0
  %1359 = vmatpush1.msra.mxu0 %v40
  %1360 = vmatprep.subr.mxu0 0.0
  %1361 = vmatpush1.msra.mxu0 %v41
  %1362 = vmatprep.subr.mxu0 0.0
  %1363 = vmatpush1.msra.mxu0 %v42
  %1364 = vmatprep.subr.mxu0 0.0
  %1365 = vmatpush1.msra.mxu0 %v43
  %1366 = vmatprep.subr.mxu0 0.0
  %1367 = vmatpush1.msra.mxu0 %v44
  %1368 = vmatprep.subr.mxu0 0.0
  %1369 = vmatpush1.msra.mxu0 %v45
  %1370 = vmatprep.subr.mxu0 0.0
  %1371 = vmatpush1.msra.mxu0 %v46
  %1372 = vmatprep.subr.mxu0 0.0
  %1373 = vmatpush1.msra.mxu0 %v47
  %1374 = vmatprep.subr.mxu0 0.0
  %1375 = vmatpush1.msra.mxu0 %v48
  %1376 = vmatprep.subr.mxu0 0.0
  %1377 = vmatpush1.msra.mxu0 %v49
  %1378 = vmatprep.subr.mxu0 0.0
  %1379 = vmatpush1.msra.mxu0 %v50
  %1380 = vmatprep.subr.mxu0 0.0
  %1381 = vmatpush1.msra.mxu0 %v51
  %1382 = vmatprep.subr.mxu0 0.0
  %1383 = vmatpush1.msra.mxu0 0.0
  %1384 = vmatprep.subr.mxu0 0.0
  %1385 = vmatpush1.msra.mxu0 0.0
  %1386 = vmatprep.subr.mxu0 0.0
  %1387 = vmatpush1.msra.mxu0 0.0
  %1388 = vmatprep.subr.mxu0 0.0
  %1389 = vmatpush1.msra.mxu0 0.0
  %1390 = vmatprep.subr.mxu0 0.0
  %1391 = vmatpush1.msra.mxu0 0.0
  %1392 = vmatprep.subr.mxu0 0.0
  %1393 = vmatpush1.msra.mxu0 0.0
  %1394 = vmatprep.subr.mxu0 0.0
  %1395 = vmatpush1.msra.mxu0 0.0
  %1396 = vmatprep.subr.mxu0 0.0
  %1397 = vmatpush1.msra.mxu0 0.0
  %1398 = vmatprep.subr.mxu0 0.0
  %1399 = vmatpush1.msra.mxu0 0.0
  %1400 = vmatprep.subr.mxu0 0.0
  %1401 = vmatpush1.msra.mxu0 0.0
  %1402 = vmatprep.subr.mxu0 0.0
  %1403 = vmatpush1.msra.mxu0 0.0
  %1404 = vmatprep.subr.mxu0 0.0
  %1405 = vmatpush1.msra.mxu0 0.0
  %1406 = vmatprep.subr.mxu0 0.0
  %1407 = vmatpush1.msra.mxu0 0.0
  %1408 = vmatprep.subr.mxu0 0.0
  %1409 = vmatpush1.msra.mxu0 0.0
  %1410 = vmatprep.subr.mxu0 0.0
  %1411 = vmatpush1.msra.mxu0 0.0
  %1412 = vmatprep.subr.mxu0 0.0
  %1413 = vmatpush1.msra.mxu0 0.0
  %1414 = vmatprep.mubr.f32.mxu0 0.0
  %1415 = vmatmul.mubr.f32.gmra.mrb[0].mxu0 %v1273
  %v1416 = vpop.f32.mrb[0].mxu0
  %v1417 = vadd.f32 %v158, %v1416
  %v1418 = vpop.f32.mrb[0].mxu0
  %1419 = vdwg.mxu0
  %1420 = vmatprep.subr.mxu0 0.0
  %1421 = vmatpush1.msra.mxu0 %v53
  %1422 = vmatprep.subr.mxu0 0.0
  %1423 = vmatpush1.msra.mxu0 %v54
  %1424 = vmatprep.subr.mxu0 0.0
  %1425 = vmatpush1.msra.mxu0 %v55
  %1426 = vmatprep.subr.mxu0 0.0
  %1427 = vmatpush1.msra.mxu0 %v56
  %1428 = vmatprep.subr.mxu0 0.0
  %1429 = vmatpush1.msra.mxu0 %v57
  %1430 = vmatprep.subr.mxu0 0.0
  %1431 = vmatpush1.msra.mxu0 %v58
  %1432 = vmatprep.subr.mxu0 0.0
  %1433 = vmatpush1.msra.mxu0 %v59
  %1434 = vmatprep.subr.mxu0 0.0
  %1435 = vmatpush1.msra.mxu0 %v60
  %1436 = vmatprep.subr.mxu0 0.0
  %1437 = vmatpush1.msra.mxu0 %v61
  %1438 = vmatprep.subr.mxu0 0.0
  %1439 = vmatpush1.msra.mxu0 %v62
  %1440 = vmatprep.subr.mxu0 0.0
  %1441 = vmatpush1.msra.mxu0 %v63
  %1442 = vmatprep.subr.mxu0 0.0
  %1443 = vmatpush1.msra.mxu0 %v64
  %1444 = vmatprep.subr.mxu0 0.0
  %1445 = vmatpush1.msra.mxu0 %v65
  %1446 = vmatprep.subr.mxu0 0.0
  %1447 = vmatpush1.msra.mxu0 %v66
  %1448 = vmatprep.subr.mxu0 0.0
  %1449 = vmatpush1.msra.mxu0 %v67
  %1450 = vmatprep.subr.mxu0 0.0
  %1451 = vmatpush1.msra.mxu0 %v68
  %1452 = vmatprep.subr.mxu0 0.0
  %1453 = vmatpush1.msra.mxu0 0.0
  %1454 = vmatprep.subr.mxu0 0.0
  %1455 = vmatpush1.msra.mxu0 0.0
  %1456 = vmatprep.subr.mxu0 0.0
  %1457 = vmatpush1.msra.mxu0 0.0
  %1458 = vmatprep.subr.mxu0 0.0
  %1459 = vmatpush1.msra.mxu0 0.0
  %1460 = vmatprep.subr.mxu0 0.0
  %1461 = vmatpush1.msra.mxu0 0.0
  %1462 = vmatprep.subr.mxu0 0.0
  %1463 = vmatpush1.msra.mxu0 0.0
  %1464 = vmatprep.subr.mxu0 0.0
  %1465 = vmatpush1.msra.mxu0 0.0
  %1466 = vmatprep.subr.mxu0 0.0
  %1467 = vmatpush1.msra.mxu0 0.0
  %1468 = vmatprep.subr.mxu0 0.0
  %1469 = vmatpush1.msra.mxu0 0.0
  %1470 = vmatprep.subr.mxu0 0.0
  %1471 = vmatpush1.msra.mxu0 0.0
  %1472 = vmatprep.subr.mxu0 0.0
  %1473 = vmatpush1.msra.mxu0 0.0
  %1474 = vmatprep.subr.mxu0 0.0
  %1475 = vmatpush1.msra.mxu0 0.0
  %1476 = vmatprep.subr.mxu0 0.0
  %1477 = vmatpush1.msra.mxu0 0.0
  %1478 = vmatprep.subr.mxu0 0.0
  %1479 = vmatpush1.msra.mxu0 0.0
  %1480 = vmatprep.subr.mxu0 0.0
  %1481 = vmatpush1.msra.mxu0 0.0
  %1482 = vmatprep.subr.mxu0 0.0
  %1483 = vmatpush1.msra.mxu0 0.0
  %1484 = vmatprep.mubr.f32.mxu0 0.0
  %1485 = vmatmul.mubr.f32.gmra.mrb[0].mxu0 %v1273
  %v1486 = vpop.f32.mrb[0].mxu0
  %v1487 = vadd.f32 %v234, %v1486
  %v1488 = vpop.f32.mrb[0].mxu0
  %1489 = vdwg.mxu0
  %v1490 = vadd.f32 %v1277, %v1347
  %v1491 = vxor.u32 %v1490, 2147483648
  %v1492 = vmul.f32 %v1491, 1.442695
  %v1493 = vpow.pop %v1492
  %v1494 = vadd.f32 %v1493, 1.0
  %v1495 = vrcp.pop %v1494
  %v1496 = vmul.f32 1.0, %v1495
  %v1497 = vadd.f32 %v1278, %v1417
  %v1498 = vxor.u32 %v1497, 2147483648
  %v1499 = vmul.f32 %v1498, 1.442695
  %v1500 = vpow.pop %v1499
  %v1501 = vadd.f32 %v1500, 1.0
  %v1502 = vrcp.pop %v1501
  %v1503 = vmul.f32 1.0, %v1502
  %v1504 = vmul.f32 %v1496, %v1487
  %v1505 = vadd.f32 %v1279, %v1504
  %v1506 = vtanh.pop %v1505
  %v1507 = vsub.f32 1.0, %v1503
  %v1508 = vmul.f32 %v1507, %v1506
  %v1509 = vmul.f32 %v1503, %v1273
  %v1510 = vadd.f32 %v1508, %v1509
  %s1511 = scalar_lea.vmem %s3, 40
  %1512 = vst [vmem:[%s1511] sm:$0xff] %v1510
  %s1513 = scalar_lea.vmem %s0, 144
  %v1514 = vld [vmem:[%s1513] sm:$0xff]
  %v1515 = vld [vmem:[%s1513 + $0x8] sm:$0xff]
  %v1516 = vld [vmem:[%s1513 + $0x10] sm:$0xff]
  %1517 = vmatprep.subr.mxu0 0.0
  %1518 = vmatpush1.msra.mxu0 %v19
  %1519 = vmatprep.subr.mxu0 0.0
  %1520 = vmatpush1.msra.mxu0 %v20
  %1521 = vmatprep.subr.mxu0 0.0
  %1522 = vmatpush1.msra.mxu0 %v21
  %1523 = vmatprep.subr.mxu0 0.0
  %1524 = vmatpush1.msra.mxu0 %v22
  %1525 = vmatprep.subr.mxu0 0.0
  %1526 = vmatpush1.msra.mxu0 %v23
  %1527 = vmatprep.subr.mxu0 0.0
  %1528 = vmatpush1.msra.mxu0 %v24
  %1529 = vmatprep.subr.mxu0 0.0
  %1530 = vmatpush1.msra.mxu0 %v25
  %1531 = vmatprep.subr.mxu0 0.0
  %1532 = vmatpush1.msra.mxu0 %v26
  %1533 = vmatprep.subr.mxu0 0.0
  %1534 = vmatpush1.msra.mxu0 %v27
  %1535 = vmatprep.subr.mxu0 0.0
  %1536 = vmatpush1.msra.mxu0 %v28
  %1537 = vmatprep.subr.mxu0 0.0
  %1538 = vmatpush1.msra.mxu0 %v29
  %1539 = vmatprep.subr.mxu0 0.0
  %1540 = vmatpush1.msra.mxu0 %v30
  %1541 = vmatprep.subr.mxu0 0.0
  %1542 = vmatpush1.msra.mxu0 %v31
  %1543 = vmatprep.subr.mxu0 0.0
  %1544 = vmatpush1.msra.mxu0 %v32
  %1545 = vmatprep.subr.mxu0 0.0
  %1546 = vmatpush1.msra.mxu0 %v33
  %1547 = vmatprep.subr.mxu0 0.0
  %1548 = vmatpush1.msra.mxu0 %v34
  %1549 = vmatprep.subr.mxu0 0.0
  %1550 = vmatpush1.msra.mxu0 0.0
  %1551 = vmatprep.subr.mxu0 0.0
  %1552 = vmatpush1.msra.mxu0 0.0
  %1553 = vmatprep.subr.mxu0 0.0
  %1554 = vmatpush1.msra.mxu0 0.0
  %1555 = vmatprep.subr.mxu0 0.0
  %1556 = vmatpush1.msra.mxu0 0.0
  %1557 = vmatprep.subr.mxu0 0.0
  %1558 = vmatpush1.msra.mxu0 0.0
  %1559 = vmatprep.subr.mxu0 0.0
  %1560 = vmatpush1.msra.mxu0 0.0
  %1561 = vmatprep.subr.mxu0 0.0
  %1562 = vmatpush1.msra.mxu0 0.0
  %1563 = vmatprep.subr.mxu0 0.0
  %1564 = vmatpush1.msra.mxu0 0.0
  %1565 = vmatprep.subr.mxu0 0.0
  %1566 = vmatpush1.msra.mxu0 0.0
  %1567 = vmatprep.subr.mxu0 0.0
  %1568 = vmatpush1.msra.mxu0 0.0
  %1569 = vmatprep.subr.mxu0 0.0
  %1570 = vmatpush1.msra.mxu0 0.0
  %1571 = vmatprep.subr.mxu0 0.0
  %1572 = vmatpush1.msra.mxu0 0.0
  %1573 = vmatprep.subr.mxu0 0.0
  %1574 = vmatpush1.msra.mxu0 0.0
  %1575 = vmatprep.subr.mxu0 0.0
  %1576 = vmatpush1.msra.mxu0 0.0
  %1577 = vmatprep.subr.mxu0 0.0
  %1578 = vmatpush1.msra.mxu0 0.0
  %1579 = vmatprep.subr.mxu0 0.0
  %1580 = vmatpush1.msra.mxu0 0.0
  %1581 = vmatprep.mubr.f32.mxu0 0.0
  %1582 = vmatmul.mubr.f32.gmra.mrb[0].mxu0 %v1510
  %v1583 = vpop.f32.mrb[0].mxu0
  %v1584 = vadd.f32 %v82, %v1583
  %v1585 = vpop.f32.mrb[0].mxu0
  %1586 = vdwg.mxu0
  %1587 = vmatprep.subr.mxu0 0.0
  %1588 = vmatpush1.msra.mxu0 %v36
  %1589 = vmatprep.subr.mxu0 0.0
  %1590 = vmatpush1.msra.mxu0 %v37
  %1591 = vmatprep.subr.mxu0 0.0
  %1592 = vmatpush1.msra.mxu0 %v38
  %1593 = vmatprep.subr.mxu0 0.0
  %1594 = vmatpush1.msra.mxu0 %v39
  %1595 = vmatprep.subr.mxu0 0.0
  %1596 = vmatpush1.msra.mxu0 %v40
  %1597 = vmatprep.subr.mxu0 0.0
  %1598 = vmatpush1.msra.mxu0 %v41
  %1599 = vmatprep.subr.mxu0 0.0
  %1600 = vmatpush1.msra.mxu0 %v42
  %1601 = vmatprep.subr.mxu0 0.0
  %1602 = vmatpush1.msra.mxu0 %v43
  %1603 = vmatprep.subr.mxu0 0.0
  %1604 = vmatpush1.msra.mxu0 %v44
  %1605 = vmatprep.subr.mxu0 0.0
  %1606 = vmatpush1.msra.mxu0 %v45
  %1607 = vmatprep.subr.mxu0 0.0
  %1608 = vmatpush1.msra.mxu0 %v46
  %1609 = vmatprep.subr.mxu0 0.0
  %1610 = vmatpush1.msra.mxu0 %v47
  %1611 = vmatprep.subr.mxu0 0.0
  %1612 = vmatpush1.msra.mxu0 %v48
  %1613 = vmatprep.subr.mxu0 0.0
  %1614 = vmatpush1.msra.mxu0 %v49
  %1615 = vmatprep.subr.mxu0 0.0
  %1616 = vmatpush1.msra.mxu0 %v50
  %1617 = vmatprep.subr.mxu0 0.0
  %1618 = vmatpush1.msra.mxu0 %v51
  %1619 = vmatprep.subr.mxu0 0.0
  %1620 = vmatpush1.msra.mxu0 0.0
  %1621 = vmatprep.subr.mxu0 0.0
  %1622 = vmatpush1.msra.mxu0 0.0
  %1623 = vmatprep.subr.mxu0 0.0
  %1624 = vmatpush1.msra.mxu0 0.0
  %1625 = vmatprep.subr.mxu0 0.0
  %1626 = vmatpush1.msra.mxu0 0.0
  %1627 = vmatprep.subr.mxu0 0.0
  %1628 = vmatpush1.msra.mxu0 0.0
  %1629 = vmatprep.subr.mxu0 0.0
  %1630 = vmatpush1.msra.mxu0 0.0
  %1631 = vmatprep.subr.mxu0 0.0
  %1632 = vmatpush1.msra.mxu0 0.0
  %1633 = vmatprep.subr.mxu0 0.0
  %1634 = vmatpush1.msra.mxu0 0.0
  %1635 = vmatprep.subr.mxu0 0.0
  %1636 = vmatpush1.msra.mxu0 0.0
  %1637 = vmatprep.subr.mxu0 0.0
  %1638 = vmatpush1.msra.mxu0 0.0
  %1639 = vmatprep.subr.mxu0 0.0
  %1640 = vmatpush1.msra.mxu0 0.0
  %1641 = vmatprep.subr.mxu0 0.0
  %1642 = vmatpush1.msra.mxu0 0.0
  %1643 = vmatprep.subr.mxu0 0.0
  %1644 = vmatpush1.msra.mxu0 0.0
  %1645 = vmatprep.subr.mxu0 0.0
  %1646 = vmatpush1.msra.mxu0 0.0
  %1647 = vmatprep.subr.mxu0 0.0
  %1648 = vmatpush1.msra.mxu0 0.0
  %1649 = vmatprep.subr.mxu0 0.0
  %1650 = vmatpush1.msra.mxu0 0.0
  %1651 = vmatprep.mubr.f32.mxu0 0.0
  %1652 = vmatmul.mubr.f32.gmra.mrb[0].mxu0 %v1510
  %v1653 = vpop.f32.mrb[0].mxu0
  %v1654 = vadd.f32 %v158, %v1653
  %v1655 = vpop.f32.mrb[0].mxu0
  %1656 = vdwg.mxu0
  %1657 = vmatprep.subr.mxu0 0.0
  %1658 = vmatpush1.msra.mxu0 %v53
  %1659 = vmatprep.subr.mxu0 0.0
  %1660 = vmatpush1.msra.mxu0 %v54
  %1661 = vmatprep.subr.mxu0 0.0
  %1662 = vmatpush1.msra.mxu0 %v55
  %1663 = vmatprep.subr.mxu0 0.0
  %1664 = vmatpush1.msra.mxu0 %v56
  %1665 = vmatprep.subr.mxu0 0.0
  %1666 = vmatpush1.msra.mxu0 %v57
  %1667 = vmatprep.subr.mxu0 0.0
  %1668 = vmatpush1.msra.mxu0 %v58
  %1669 = vmatprep.subr.mxu0 0.0
  %1670 = vmatpush1.msra.mxu0 %v59
  %1671 = vmatprep.subr.mxu0 0.0
  %1672 = vmatpush1.msra.mxu0 %v60
  %1673 = vmatprep.subr.mxu0 0.0
  %1674 = vmatpush1.msra.mxu0 %v61
  %1675 = vmatprep.subr.mxu0 0.0
  %1676 = vmatpush1.msra.mxu0 %v62
  %1677 = vmatprep.subr.mxu0 0.0
  %1678 = vmatpush1.msra.mxu0 %v63
  %1679 = vmatprep.subr.mxu0 0.0
  %1680 = vmatpush1.msra.mxu0 %v64
  %1681 = vmatprep.subr.mxu0 0.0
  %1682 = vmatpush1.msra.mxu0 %v65
  %1683 = vmatprep.subr.mxu0 0.0
  %1684 = vmatpush1.msra.mxu0 %v66
  %1685 = vmatprep.subr.mxu0 0.0
  %1686 = vmatpush1.msra.mxu0 %v67
  %1687 = vmatprep.subr.mxu0 0.0
  %1688 = vmatpush1.msra.mxu0 %v68
  %1689 = vmatprep.subr.mxu0 0.0
  %1690 = vmatpush1.msra.mxu0 0.0
  %1691 = vmatprep.subr.mxu0 0.0
  %1692 = vmatpush1.msra.mxu0 0.0
  %1693 = vmatprep.subr.mxu0 0.0
  %1694 = vmatpush1.msra.mxu0 0.0
  %1695 = vmatprep.subr.mxu0 0.0
  %1696 = vmatpush1.msra.mxu0 0.0
  %1697 = vmatprep.subr.mxu0 0.0
  %1698 = vmatpush1.msra.mxu0 0.0
  %1699 = vmatprep.subr.mxu0 0.0
  %1700 = vmatpush1.msra.mxu0 0.0
  %1701 = vmatprep.subr.mxu0 0.0
  %1702 = vmatpush1.msra.mxu0 0.0
  %1703 = vmatprep.subr.mxu0 0.0
  %1704 = vmatpush1.msra.mxu0 0.0
  %1705 = vmatprep.subr.mxu0 0.0
  %1706 = vmatpush1.msra.mxu0 0.0
  %1707 = vmatprep.subr.mxu0 0.0
  %1708 = vmatpush1.msra.mxu0 0.0
  %1709 = vmatprep.subr.mxu0 0.0
  %1710 = vmatpush1.msra.mxu0 0.0
  %1711 = vmatprep.subr.mxu0 0.0
  %1712 = vmatpush1.msra.mxu0 0.0
  %1713 = vmatprep.subr.mxu0 0.0
  %1714 = vmatpush1.msra.mxu0 0.0
  %1715 = vmatprep.subr.mxu0 0.0
  %1716 = vmatpush1.msra.mxu0 0.0
  %1717 = vmatprep.subr.mxu0 0.0
  %1718 = vmatpush1.msra.mxu0 0.0
  %1719 = vmatprep.subr.mxu0 0.0
  %1720 = vmatpush1.msra.mxu0 0.0
  %1721 = vmatprep.mubr.f32.mxu0 0.0
  %1722 = vmatmul.mubr.f32.gmra.mrb[0].mxu0 %v1510
  %v1723 = vpop.f32.mrb[0].mxu0
  %v1724 = vadd.f32 %v234, %v1723
  %v1725 = vpop.f32.mrb[0].mxu0
  %1726 = vdwg.mxu0
  %v1727 = vadd.f32 %v1514, %v1584
  %v1728 = vxor.u32 %v1727, 2147483648
  %v1729 = vmul.f32 %v1728, 1.442695
  %v1730 = vpow.pop %v1729
  %v1731 = vadd.f32 %v1730, 1.0
  %v1732 = vrcp.pop %v1731
  %v1733 = vmul.f32 1.0, %v1732
  %v1734 = vadd.f32 %v1515, %v1654
  %v1735 = vxor.u32 %v1734, 2147483648
  %v1736 = vmul.f32 %v1735, 1.442695
  %v1737 = vpow.pop %v1736
  %v1738 = vadd.f32 %v1737, 1.0
  %v1739 = vrcp.pop %v1738
  %v1740 = vmul.f32 1.0, %v1739
  %v1741 = vmul.f32 %v1733, %v1724
  %v1742 = vadd.f32 %v1516, %v1741
  %v1743 = vtanh.pop %v1742
  %v1744 = vsub.f32 1.0, %v1740
  %v1745 = vmul.f32 %v1744, %v1743
  %v1746 = vmul.f32 %v1740, %v1510
  %v1747 = vadd.f32 %v1745, %v1746
  %s1748 = scalar_lea.vmem %s3, 48
  %1749 = vst [vmem:[%s1748] sm:$0xff] %v1747
  %s1750 = scalar_lea.vmem %s0, 168
  %v1751 = vld [vmem:[%s1750] sm:$0xff]
  %v1752 = vld [vmem:[%s1750 + $0x8] sm:$0xff]
  %v1753 = vld [vmem:[%s1750 + $0x10] sm:$0xff]
  %1754 = vmatprep.subr.mxu0 0.0
  %1755 = vmatpush1.msra.mxu0 %v19
  %1756 = vmatprep.subr.mxu0 0.0
  %1757 = vmatpush1.msra.mxu0 %v20
  %1758 = vmatprep.subr.mxu0 0.0
  %1759 = vmatpush1.msra.mxu0 %v21
  %1760 = vmatprep.subr.mxu0 0.0
  %1761 = vmatpush1.msra.mxu0 %v22
  %1762 = vmatprep.subr.mxu0 0.0
  %1763 = vmatpush1.msra.mxu0 %v23
  %1764 = vmatprep.subr.mxu0 0.0
  %1765 = vmatpush1.msra.mxu0 %v24
  %1766 = vmatprep.subr.mxu0 0.0
  %1767 = vmatpush1.msra.mxu0 %v25
  %1768 = vmatprep.subr.mxu0 0.0
  %1769 = vmatpush1.msra.mxu0 %v26
  %1770 = vmatprep.subr.mxu0 0.0
  %1771 = vmatpush1.msra.mxu0 %v27
  %1772 = vmatprep.subr.mxu0 0.0
  %1773 = vmatpush1.msra.mxu0 %v28
  %1774 = vmatprep.subr.mxu0 0.0
  %1775 = vmatpush1.msra.mxu0 %v29
  %1776 = vmatprep.subr.mxu0 0.0
  %1777 = vmatpush1.msra.mxu0 %v30
  %1778 = vmatprep.subr.mxu0 0.0
  %1779 = vmatpush1.msra.mxu0 %v31
  %1780 = vmatprep.subr.mxu0 0.0
  %1781 = vmatpush1.msra.mxu0 %v32
  %1782 = vmatprep.subr.mxu0 0.0
  %1783 = vmatpush1.msra.mxu0 %v33
  %1784 = vmatprep.subr.mxu0 0.0
  %1785 = vmatpush1.msra.mxu0 %v34
  %1786 = vmatprep.subr.mxu0 0.0
  %1787 = vmatpush1.msra.mxu0 0.0
  %1788 = vmatprep.subr.mxu0 0.0
  %1789 = vmatpush1.msra.mxu0 0.0
  %1790 = vmatprep.subr.mxu0 0.0
  %1791 = vmatpush1.msra.mxu0 0.0
  %1792 = vmatprep.subr.mxu0 0.0
  %1793 = vmatpush1.msra.mxu0 0.0
  %1794 = vmatprep.subr.mxu0 0.0
  %1795 = vmatpush1.msra.mxu0 0.0
  %1796 = vmatprep.subr.mxu0 0.0
  %1797 = vmatpush1.msra.mxu0 0.0
  %1798 = vmatprep.subr.mxu0 0.0
  %1799 = vmatpush1.msra.mxu0 0.0
  %1800 = vmatprep.subr.mxu0 0.0
  %1801 = vmatpush1.msra.mxu0 0.0
  %1802 = vmatprep.subr.mxu0 0.0
  %1803 = vmatpush1.msra.mxu0 0.0
  %1804 = vmatprep.subr.mxu0 0.0
  %1805 = vmatpush1.msra.mxu0 0.0
  %1806 = vmatprep.subr.mxu0 0.0
  %1807 = vmatpush1.msra.mxu0 0.0
  %1808 = vmatprep.subr.mxu0 0.0
  %1809 = vmatpush1.msra.mxu0 0.0
  %1810 = vmatprep.subr.mxu0 0.0
  %1811 = vmatpush1.msra.mxu0 0.0
  %1812 = vmatprep.subr.mxu0 0.0
  %1813 = vmatpush1.msra.mxu0 0.0
  %1814 = vmatprep.subr.mxu0 0.0
  %1815 = vmatpush1.msra.mxu0 0.0
  %1816 = vmatprep.subr.mxu0 0.0
  %1817 = vmatpush1.msra.mxu0 0.0
  %1818 = vmatprep.mubr.f32.mxu0 0.0
  %1819 = vmatmul.mubr.f32.gmra.mrb[0].mxu0 %v1747
  %v1820 = vpop.f32.mrb[0].mxu0
  %v1821 = vadd.f32 %v82, %v1820
  %v1822 = vpop.f32.mrb[0].mxu0
  %1823 = vdwg.mxu0
  %1824 = vmatprep.subr.mxu0 0.0
  %1825 = vmatpush1.msra.mxu0 %v36
  %1826 = vmatprep.subr.mxu0 0.0
  %1827 = vmatpush1.msra.mxu0 %v37
  %1828 = vmatprep.subr.mxu0 0.0
  %1829 = vmatpush1.msra.mxu0 %v38
  %1830 = vmatprep.subr.mxu0 0.0
  %1831 = vmatpush1.msra.mxu0 %v39
  %1832 = vmatprep.subr.mxu0 0.0
  %1833 = vmatpush1.msra.mxu0 %v40
  %1834 = vmatprep.subr.mxu0 0.0
  %1835 = vmatpush1.msra.mxu0 %v41
  %1836 = vmatprep.subr.mxu0 0.0
  %1837 = vmatpush1.msra.mxu0 %v42
  %1838 = vmatprep.subr.mxu0 0.0
  %1839 = vmatpush1.msra.mxu0 %v43
  %1840 = vmatprep.subr.mxu0 0.0
  %1841 = vmatpush1.msra.mxu0 %v44
  %1842 = vmatprep.subr.mxu0 0.0
  %1843 = vmatpush1.msra.mxu0 %v45
  %1844 = vmatprep.subr.mxu0 0.0
  %1845 = vmatpush1.msra.mxu0 %v46
  %1846 = vmatprep.subr.mxu0 0.0
  %1847 = vmatpush1.msra.mxu0 %v47
  %1848 = vmatprep.subr.mxu0 0.0
  %1849 = vmatpush1.msra.mxu0 %v48
  %1850 = vmatprep.subr.mxu0 0.0
  %1851 = vmatpush1.msra.mxu0 %v49
  %1852 = vmatprep.subr.mxu0 0.0
  %1853 = vmatpush1.msra.mxu0 %v50
  %1854 = vmatprep.subr.mxu0 0.0
  %1855 = vmatpush1.msra.mxu0 %v51
  %1856 = vmatprep.subr.mxu0 0.0
  %1857 = vmatpush1.msra.mxu0 0.0
  %1858 = vmatprep.subr.mxu0 0.0
  %1859 = vmatpush1.msra.mxu0 0.0
  %1860 = vmatprep.subr.mxu0 0.0
  %1861 = vmatpush1.msra.mxu0 0.0
  %1862 = vmatprep.subr.mxu0 0.0
  %1863 = vmatpush1.msra.mxu0 0.0
  %1864 = vmatprep.subr.mxu0 0.0
  %1865 = vmatpush1.msra.mxu0 0.0
  %1866 = vmatprep.subr.mxu0 0.0
  %1867 = vmatpush1.msra.mxu0 0.0
  %1868 = vmatprep.subr.mxu0 0.0
  %1869 = vmatpush1.msra.mxu0 0.0
  %1870 = vmatprep.subr.mxu0 0.0
  %1871 = vmatpush1.msra.mxu0 0.0
  %1872 = vmatprep.subr.mxu0 0.0
  %1873 = vmatpush1.msra.mxu0 0.0
  %1874 = vmatprep.subr.mxu0 0.0
  %1875 = vmatpush1.msra.mxu0 0.0
  %1876 = vmatprep.subr.mxu0 0.0
  %1877 = vmatpush1.msra.mxu0 0.0
  %1878 = vmatprep.subr.mxu0 0.0
  %1879 = vmatpush1.msra.mxu0 0.0
  %1880 = vmatprep.subr.mxu0 0.0
  %1881 = vmatpush1.msra.mxu0 0.0
  %1882 = vmatprep.subr.mxu0 0.0
  %1883 = vmatpush1.msra.mxu0 0.0
  %1884 = vmatprep.subr.mxu0 0.0
  %1885 = vmatpush1.msra.mxu0 0.0
  %1886 = vmatprep.subr.mxu0 0.0
  %1887 = vmatpush1.msra.mxu0 0.0
  %1888 = vmatprep.mubr.f32.mxu0 0.0
  %1889 = vmatmul.mubr.f32.gmra.mrb[0].mxu0 %v1747
  %v1890 = vpop.f32.mrb[0].mxu0
  %v1891 = vadd.f32 %v158, %v1890
  %v1892 = vpop.f32.mrb[0].mxu0
  %1893 = vdwg.mxu0
  %1894 = vmatprep.subr.mxu0 0.0
  %1895 = vmatpush1.msra.mxu0 %v53
  %1896 = vmatprep.subr.mxu0 0.0
  %1897 = vmatpush1.msra.mxu0 %v54
  %1898 = vmatprep.subr.mxu0 0.0
  %1899 = vmatpush1.msra.mxu0 %v55
  %1900 = vmatprep.subr.mxu0 0.0
  %1901 = vmatpush1.msra.mxu0 %v56
  %1902 = vmatprep.subr.mxu0 0.0
  %1903 = vmatpush1.msra.mxu0 %v57
  %1904 = vmatprep.subr.mxu0 0.0
  %1905 = vmatpush1.msra.mxu0 %v58
  %1906 = vmatprep.subr.mxu0 0.0
  %1907 = vmatpush1.msra.mxu0 %v59
  %1908 = vmatprep.subr.mxu0 0.0
  %1909 = vmatpush1.msra.mxu0 %v60
  %1910 = vmatprep.subr.mxu0 0.0
  %1911 = vmatpush1.msra.mxu0 %v61
  %1912 = vmatprep.subr.mxu0 0.0
  %1913 = vmatpush1.msra.mxu0 %v62
  %1914 = vmatprep.subr.mxu0 0.0
  %1915 = vmatpush1.msra.mxu0 %v63
  %1916 = vmatprep.subr.mxu0 0.0
  %1917 = vmatpush1.msra.mxu0 %v64
  %1918 = vmatprep.subr.mxu0 0.0
  %1919 = vmatpush1.msra.mxu0 %v65
  %1920 = vmatprep.subr.mxu0 0.0
  %1921 = vmatpush1.msra.mxu0 %v66
  %1922 = vmatprep.subr.mxu0 0.0
  %1923 = vmatpush1.msra.mxu0 %v67
  %1924 = vmatprep.subr.mxu0 0.0
  %1925 = vmatpush1.msra.mxu0 %v68
  %1926 = vmatprep.subr.mxu0 0.0
  %1927 = vmatpush1.msra.mxu0 0.0
  %1928 = vmatprep.subr.mxu0 0.0
  %1929 = vmatpush1.msra.mxu0 0.0
  %1930 = vmatprep.subr.mxu0 0.0
  %1931 = vmatpush1.msra.mxu0 0.0
  %1932 = vmatprep.subr.mxu0 0.0
  %1933 = vmatpush1.msra.mxu0 0.0
  %1934 = vmatprep.subr.mxu0 0.0
  %1935 = vmatpush1.msra.mxu0 0.0
  %1936 = vmatprep.subr.mxu0 0.0
  %1937 = vmatpush1.msra.mxu0 0.0
  %1938 = vmatprep.subr.mxu0 0.0
  %1939 = vmatpush1.msra.mxu0 0.0
  %1940 = vmatprep.subr.mxu0 0.0
  %1941 = vmatpush1.msra.mxu0 0.0
  %1942 = vmatprep.subr.mxu0 0.0
  %1943 = vmatpush1.msra.mxu0 0.0
  %1944 = vmatprep.subr.mxu0 0.0
  %1945 = vmatpush1.msra.mxu0 0.0
  %1946 = vmatprep.subr.mxu0 0.0
  %1947 = vmatpush1.msra.mxu0 0.0
  %1948 = vmatprep.subr.mxu0 0.0
  %1949 = vmatpush1.msra.mxu0 0.0
  %1950 = vmatprep.subr.mxu0 0.0
  %1951 = vmatpush1.msra.mxu0 0.0
  %1952 = vmatprep.subr.mxu0 0.0
  %1953 = vmatpush1.msra.mxu0 0.0
  %1954 = vmatprep.subr.mxu0 0.0
  %1955 = vmatpush1.msra.mxu0 0.0
  %1956 = vmatprep.subr.mxu0 0.0
  %1957 = vmatpush1.msra.mxu0 0.0
  %1958 = vmatprep.mubr.f32.mxu0 0.0
  %1959 = vmatmul.mubr.f32.gmra.mrb[0].mxu0 %v1747
  %v1960 = vpop.f32.mrb[0].mxu0
  %v1961 = vadd.f32 %v234, %v1960
  %v1962 = vpop.f32.mrb[0].mxu0
  %1963 = vdwg.mxu0
  %v1964 = vadd.f32 %v1751, %v1821
  %v1965 = vxor.u32 %v1964, 2147483648
  %v1966 = vmul.f32 %v1965, 1.442695
  %v1967 = vpow.pop %v1966
  %v1968 = vadd.f32 %v1967, 1.0
  %v1969 = vrcp.pop %v1968
  %v1970 = vmul.f32 1.0, %v1969
  %v1971 = vadd.f32 %v1752, %v1891
  %v1972 = vxor.u32 %v1971, 2147483648
  %v1973 = vmul.f32 %v1972, 1.442695
  %v1974 = vpow.pop %v1973
  %v1975 = vadd.f32 %v1974, 1.0
  %v1976 = vrcp.pop %v1975
  %v1977 = vmul.f32 1.0, %v1976
  %v1978 = vmul.f32 %v1970, %v1961
  %v1979 = vadd.f32 %v1753, %v1978
  %v1980 = vtanh.pop %v1979
  %v1981 = vsub.f32 1.0, %v1977
  %v1982 = vmul.f32 %v1981, %v1980
  %v1983 = vmul.f32 %v1977, %v1747
  %v1984 = vadd.f32 %v1982, %v1983
  %s1985 = scalar_lea.vmem %s3, 56
  %1986 = vst [vmem:[%s1985] sm:$0xff] %v1984
  %1987 = vst [vmem:[#allocation2] sm:$0xff] %v1984
  // Predicated region
  $region18: #{gru_encoder_forward.1} parent=0 // pred_check
    _
  $region19: #{gru_encoder_forward.1} parent=0 // pred_check_branch
    %1989 = sbr.rel (0) target = $region21
  $region20: #{gru_encoder_forward.1} parent=0 // pred_region
    _
  $region21: #{gru_encoder_forward.1} parent=0 // pred_fallthru
    _
  // Predicated region
  $region22: #{gru_encoder_forward.1} parent=0 // pred_check
    _
  $region23: #{gru_encoder_forward.1} parent=0 // pred_check_branch
    %1991 = sbr.rel (0) target = $region25
  $region24: #{gru_encoder_forward.1} parent=0 // pred_region
    _
  $region25: #{gru_encoder_forward.1} parent=0 // pred_fallthru
    _

</llo_original>
